<compile_context>
chip_gen: v7x
topology: tpu7x:2x2x1
jax: 0.10.0
libtpu: 0.0.40
codegen_flags: <defaults>
</compile_context>

<pallas_src>
import functools

import jax
import jax.numpy as jnp
from jax import lax
from jax.experimental import pallas as pl
from jax.experimental.pallas import tpu as pltpu


def _bigru_kernel(emb_ref, w_ih_ref, w_hh_ref, b_g_ref, b_n_ref,
                  w_fc_ref, b_fc_ref,
                  out_ref, hidden_ref,
                  h_scr, *, H, tc, t_valid):
    c = pl.program_id(0)
    nc = pl.num_programs(0)

    @pl.when(c == 0)
    def _():
        h_scr[...] = jnp.zeros_like(h_scr)

    Bp = h_scr.shape[0]

    # Hoisted loads / broadcasts (kept out of the unrolled step loop).
    # TODO(synk): at production H, feed the dots from ref slices and cap the
    # unroll (sweep 2/4/8) so the materialized weights + live unrolled bodies
    # don't spill the 64-vreg file.
    w_ih = w_ih_ref[...]                                   # (2E, 6H) packed
    w_hh = w_hh_ref[...]                                   # (2H, 6H) block-diag
    b_g = jnp.broadcast_to(b_g_ref[...], (Bp, 6 * H))      # folded gi biases
    b_n = jnp.broadcast_to(b_n_ref[...], (Bp, 2 * H))      # b_hh_n (inside r*())

    ragged = (t_valid % tc) != 0                            # static (Python)

    def body(i, h):
        # Input projection: no dependency on h -> off the serial critical
        # path; the scheduler overlaps it with the previous step's gate math.
        gi = jnp.dot(emb_ref[i], w_ih, preferred_element_type=jnp.float32) + b_g
        # One packed MXU dot covers both directions' hidden projection.
        gh = jnp.dot(h, w_hh, preferred_element_type=jnp.float32)
        rz = jax.nn.sigmoid(gi[:, :4 * H] + gh[:, :4 * H])
        r = rz[:, :2 * H]                                   # [r_f | r_b]
        z = rz[:, 2 * H:]                                   # [z_f | z_b]
        n = jnp.tanh(gi[:, 4 * H:] + r * (gh[:, 4 * H:] + b_n))
        h_new = (1.0 - z) * n + z * h                       # packed blend
        if ragged:
            # Padded time steps (only in the last chunk) are identity updates.
            keep = (c * tc + i < t_valid).astype(jnp.float32)
            h_new = keep * h_new + (1.0 - keep) * h
        out_ref[i] = h_new
        return h_new

    # Hidden-state carry lives in VMEM scratch across grid (chunk) iterations.
    h_scr[...] = lax.fori_loop(0, tc, body, h_scr[...], unroll=True)

    @pl.when(c == nc - 1)
    def _():
        # Packed carry is exactly cat(h_fwd_final, h_bwd_final): no concat.
        acc = jnp.dot(h_scr[...], w_fc_ref[...],
                      preferred_element_type=jnp.float32)
        hidden_ref[...] = jnp.tanh(acc + b_fc_ref[...])


def encoder_forward(src, params, *, time_chunk=16):
    """src: (T, B) int32 -> (outputs (T, B, 2H), hidden (B, D_dec))."""
    f32 = jnp.float32
    T, B = src.shape
    H = params["w_hh_f"].shape[1]
    E = params["w_ih_f"].shape[1]
    D_dec = params["w_fc"].shape[0]

    # ---- glue / layout prep (plain XLA) -----------------------------------
    embedded = params["embedding"][src].astype(f32)         # (T, B, E) gather
    # TODO(synk): nn.Dropout omitted (eval-mode / identity semantics).

    # Pad batch to a multiple of 8 so the sublane axis is dense in every tile.
    Bp = max(8, ((B + 7) // 8) * 8)
    if Bp != B:
        embedded = jnp.pad(embedded, ((0, 0), (0, Bp - B), (0, 0)))

    # Time chunking: pad T up to a multiple of time_chunk (padded steps are
    # masked to identity in-kernel) -- never degrade to tc=1 for awkward T.
    tc = max(1, min(time_chunk, T))
    nc = -(-T // tc)
    Tp = nc * tc

    # Pack fwd-time and reversed-time embeddings side by side -> one stream,
    # forward-only chunk indexing.  Only E-wide activations cross HBM (the
    # 3H-wide gi never materializes: it is computed in-kernel per step).
    emb_rev = embedded[::-1]
    if Tp != T:
        tpad = ((0, Tp - T), (0, 0), (0, 0))
        embedded = jnp.pad(embedded, tpad)
        emb_rev = jnp.pad(emb_rev, tpad)
    emb_packed = jnp.concatenate([embedded, emb_rev], axis=-1)   # (Tp, Bp, 2E)
    # TODO(synk): for production T/B stream emb_packed and the output in bf16
    # (keep f32 gate math in-kernel) to halve HBM bytes, esp. on v5e.

    # ---- pack weights gate-wise: columns [r_f r_b | z_f z_b | n_f n_b] -----
    def pack_w(w_f, w_b):
        din = w_f.shape[1]
        zeros = jnp.zeros((din, H), f32)
        blocks = []
        for g in range(3):
            blocks.append(jnp.concatenate([w_f[g * H:(g + 1) * H].T, zeros], 0))
            blocks.append(jnp.concatenate([zeros, w_b[g * H:(g + 1) * H].T], 0))
        return jnp.concatenate(blocks, axis=1)               # (2*din, 6H)

    w_ih_p = pack_w(params["w_ih_f"], params["w_ih_b"])       # (2E, 6H)
    w_hh_p = pack_w(params["w_hh_f"], params["w_hh_b"])       # (2H, 6H)

    def gate_bias():
        parts = []
        for g in range(3):
            for d in ("f", "b"):
                b = params[f"b_ih_{d}"][0, g * H:(g + 1) * H]
                if g < 2:                      # fold b_hh for r,z gates only
                    b = b + params[f"b_hh_{d}"][0, g * H:(g + 1) * H]
                parts.append(b)
        return jnp.concatenate(parts)[None, :]                # (1, 6H)

    b_g = gate_bias()
    b_n = jnp.concatenate([params["b_hh_f"][0, 2 * H:],
                           params["b_hh_b"][0, 2 * H:]])[None, :]   # (1, 2H)
    w_fc_t = params["w_fc"].T                                  # (2H, D_dec)
    b_fc = params["b_fc"]                                      # (1, D_dec)

    const = lambda shape: pl.BlockSpec(shape, lambda c: (0, 0))
    # TODO(synk): at production H/D_dec add pipeline_mode=pl.Buffered(1) to the
    # constant weight specs and re-derive tc / vmem_limit_bytes per chip
    # generation (v7x has a 64 MiB physical VMEM ceiling).
    in_specs = [
        pl.BlockSpec((tc, Bp, 2 * E), lambda c: (c, 0, 0)),    # packed emb
        const((2 * E, 6 * H)), const((2 * H, 6 * H)),
        const((1, 6 * H)), const((1, 2 * H)),
        const((2 * H, D_dec)), const((1, D_dec)),
    ]
    out_specs = [
        pl.BlockSpec((tc, Bp, 2 * H), lambda c: (c, 0, 0)),    # packed outs
        pl.BlockSpec((Bp, D_dec), lambda c: (0, 0)),           # hidden
    ]
    out_shape = (
        jax.ShapeDtypeStruct((Tp, Bp, 2 * H), f32),
        jax.ShapeDtypeStruct((Bp, D_dec), f32),
    )

    out_pk, hidden = pl.pallas_call(
        functools.partial(_bigru_kernel, H=H, tc=tc, t_valid=T),
        out_shape=out_shape,
        grid_spec=pltpu.PrefetchScalarGridSpec(
            num_scalar_prefetch=0,
            grid=(nc,),
            in_specs=in_specs,
            out_specs=out_specs,
            scratch_shapes=[pltpu.VMEM((Bp, 2 * H), f32)],
        ),
        compiler_params=pltpu.CompilerParams(
            dimension_semantics=("arbitrary",),                # recurrence
            vmem_limit_bytes=32 * 1024 * 1024),
    )(emb_packed, w_ih_p, w_hh_p, b_g, b_n, w_fc_t, b_fc)

    # Fwd half is already time-ordered; bwd half is step-ordered (time T-1..0)
    # so it gets reversed here.  Split + reverse + unpad + concat is a single
    # fused XLA pass; a downstream consumer could take out_pk/hidden directly.
    out_f = out_pk[:T, :B, :H]
    out_b = out_pk[:T, :B, H:][::-1]
    outputs = jnp.concatenate([out_f, out_b], axis=2)          # (T, B, 2H)
    return outputs, hidden[:B]


# ------------------------- pure-JAX reference ------------------------------
def _gru_dir_ref(x_seq, w_ih, w_hh, b_ih, b_hh, H):
    def step(h, x):
        gi = x @ w_ih.T + b_ih[0]
        gh = h @ w_hh.T + b_hh[0]
        r = jax.nn.sigmoid(gi[:, :H] + gh[:, :H])
        z = jax.nn.sigmoid(gi[:, H:2 * H] + gh[:, H:2 * H])
        n = jnp.tanh(gi[:, 2 * H:] + r * gh[:, 2 * H:])
        h_new = (1.0 - z) * n + z * h
        return h_new, h_new
    h0 = jnp.zeros((x_seq.shape[1], H), jnp.float32)
    h_final, outs = lax.scan(step, h0, x_seq)
    return outs, h_final


def encoder_ref(src, params):
    embedded = params["embedding"][src]
    H = params["w_hh_f"].shape[1]
    out_f, h_f = _gru_dir_ref(embedded, params["w_ih_f"], params["w_hh_f"],
                              params["b_ih_f"], params["b_hh_f"], H)
    out_b_rev, h_b = _gru_dir_ref(embedded[::-1], params["w_ih_b"], params["w_hh_b"],
                                  params["b_ih_b"], params["b_hh_b"], H)
    outputs = jnp.concatenate([out_f, out_b_rev[::-1]], axis=2)
    cat = jnp.concatenate([h_f, h_b], axis=1)
    hidden = jnp.tanh(cat @ params["w_fc"].T + params["b_fc"][0])
    return outputs, hidden


# ------------------------------- main ---------------------------------------
if __name__ == "__main__":
    INPUT_DIM, EMB_DIM, ENC_HID, DEC_HID = 20, 32, 32, 32
    T, B = 8, 2
    f32 = jnp.float32
    key = jax.random.PRNGKey(0)
    ks = jax.random.split(key, 16)
    k_gru = 1.0 / jnp.sqrt(ENC_HID)

    def u(k, shape, scale):
        return jax.random.uniform(k, shape, f32, -scale, scale)

    params = {
        "embedding": jax.random.normal(ks[0], (INPUT_DIM, EMB_DIM), f32),
        # forward direction GRU params (PyTorch gate order: r, z, n)
        "w_ih_f": u(ks[1], (3 * ENC_HID, EMB_DIM), k_gru),
        "w_hh_f": u(ks[2], (3 * ENC_HID, ENC_HID), k_gru),
        "b_ih_f": u(ks[3], (1, 3 * ENC_HID), k_gru),
        "b_hh_f": u(ks[4], (1, 3 * ENC_HID), k_gru),
        # backward direction
        "w_ih_b": u(ks[5], (3 * ENC_HID, EMB_DIM), k_gru),
        "w_hh_b": u(ks[6], (3 * ENC_HID, ENC_HID), k_gru),
        "b_ih_b": u(ks[7], (1, 3 * ENC_HID), k_gru),
        "b_hh_b": u(ks[8], (1, 3 * ENC_HID), k_gru),
        # fc: Linear(2*enc_hid -> dec_hid)
        "w_fc": u(ks[9], (DEC_HID, 2 * ENC_HID), 1.0 / jnp.sqrt(2 * ENC_HID)),
        "b_fc": u(ks[10], (1, DEC_HID), 1.0 / jnp.sqrt(2 * ENC_HID)),
    }

    src = jax.random.randint(ks[11], (T, B), 0, INPUT_DIM, dtype=jnp.int32)
    ref_outputs, ref_hidden = encoder_ref(src, params)

    # time_chunk=4 -> 2 grid steps: exercises the cross-chunk hidden carry.
    outputs, hidden = encoder_forward(src, params, time_chunk=4)
    jax.block_until_ready((outputs, hidden))
    assert outputs.shape == (T, B, 2 * ENC_HID)
    assert hidden.shape == (B, DEC_HID)
    assert jnp.allclose(outputs, ref_outputs, rtol=1e-3, atol=1e-3)
    assert jnp.allclose(hidden, ref_hidden, rtol=1e-3, atol=1e-3)

    # time_chunk=3 -> ragged last chunk (T padded 8 -> 9): exercises the
    # padded-step identity mask.
    outputs_r, hidden_r = encoder_forward(src, params, time_chunk=3)
    jax.block_until_ready((outputs_r, hidden_r))
    assert jnp.allclose(outputs_r, ref_outputs, rtol=1e-3, atol=1e-3)
    assert jnp.allclose(hidden_r, ref_hidden, rtol=1e-3, atol=1e-3)

    print("KERNEL_OK")
</pallas_src>

<mosaic_0001>
module attributes {stable_mosaic.version = 11 : i64} {
  func.func @_bigru_kernel(%arg0: i32, %arg1: memref<4x8x64xf32, #tpu.memory_space<vmem>>, %arg2: memref<64x192xf32, #tpu.memory_space<vmem>>, %arg3: memref<64x192xf32, #tpu.memory_space<vmem>>, %arg4: memref<1x192xf32, #tpu.memory_space<vmem>>, %arg5: memref<1x64xf32, #tpu.memory_space<vmem>>, %arg6: memref<64x32xf32, #tpu.memory_space<vmem>>, %arg7: memref<1x32xf32, #tpu.memory_space<vmem>>, %arg8: memref<4x8x64xf32, #tpu.memory_space<vmem>>, %arg9: memref<8x32xf32, #tpu.memory_space<vmem>>, %arg10: memref<8x64xf32, #tpu.memory_space<vmem>>) attributes {dimension_semantics = [#tpu.dimension_semantics<arbitrary>], iteration_bounds = array<i64: 2>, scalar_prefetch = 0 : i64, scratch_operands = 1 : i64, tpu.core_type = #tpu.core_type<tc>, window_params = [{transform_indices = @transform_0, window_bounds = array<i64: 4, 8, 64>}, {pipeline_mode = #tpu.pipeline_mode<synchronous>, transform_indices = @transform_1, window_bounds = array<i64: 64, 192>}, {pipeline_mode = #tpu.pipeline_mode<synchronous>, transform_indices = @transform_2, window_bounds = array<i64: 64, 192>}, {pipeline_mode = #tpu.pipeline_mode<synchronous>, transform_indices = @transform_3, window_bounds = array<i64: 1, 192>}, {pipeline_mode = #tpu.pipeline_mode<synchronous>, transform_indices = @transform_4, window_bounds = array<i64: 1, 64>}, {pipeline_mode = #tpu.pipeline_mode<synchronous>, transform_indices = @transform_5, window_bounds = array<i64: 64, 32>}, {pipeline_mode = #tpu.pipeline_mode<synchronous>, transform_indices = @transform_6, window_bounds = array<i64: 1, 32>}, {transform_indices = @transform_7, window_bounds = array<i64: 4, 8, 64>}, {pipeline_mode = #tpu.pipeline_mode<synchronous>, transform_indices = @transform_8, window_bounds = array<i64: 8, 32>}]} {
    %c0_i32 = arith.constant 0 : i32
    %0 = arith.cmpi eq, %arg0, %c0_i32 : i32
    %1 = arith.extui %0 : i1 to i32
    %c0_i32_0 = arith.constant 0 : i32
    %2 = arith.cmpi ne, %1, %c0_i32_0 : i32
    scf.if %2 {
      %cst_46 = arith.constant 0.000000e+00 : f32
      %140 = vector.broadcast %cst_46 : f32 to vector<8x64xf32>
      %c0_47 = arith.constant 0 : index
      %c0_48 = arith.constant 0 : index
      %141 = vector.load %arg10[%c0_47, %c0_48] : memref<8x64xf32, #tpu.memory_space<vmem>>, vector<8x64xf32>
      tpu.vector_store %arg10[%c0_47, %c0_48], %140 {strides = array<i32>} : memref<8x64xf32, #tpu.memory_space<vmem>>, vector<8x64xf32>,
    } else {
    }
    %c0 = arith.constant 0 : index
    %c0_1 = arith.constant 0 : index
    %3 = vector.load %arg2[%c0, %c0_1] : memref<64x192xf32, #tpu.memory_space<vmem>>, vector<64x192xf32>
    %c0_2 = arith.constant 0 : index
    %c0_3 = arith.constant 0 : index
    %4 = vector.load %arg3[%c0_2, %c0_3] : memref<64x192xf32, #tpu.memory_space<vmem>>, vector<64x192xf32>
    %c0_4 = arith.constant 0 : index
    %c0_5 = arith.constant 0 : index
    %5 = vector.load %arg4[%c0_4, %c0_5] : memref<1x192xf32, #tpu.memory_space<vmem>>, vector<1x192xf32>
    %6 = vector.shape_cast %5 : vector<1x192xf32> to vector<1x192xf32>
    %7 = vector.broadcast %6 : vector<1x192xf32> to vector<8x192xf32>
    %c0_6 = arith.constant 0 : index
    %c0_7 = arith.constant 0 : index
    %8 = vector.load %arg5[%c0_6, %c0_7] : memref<1x64xf32, #tpu.memory_space<vmem>>, vector<1x64xf32>
    %9 = vector.shape_cast %8 : vector<1x64xf32> to vector<1x64xf32>
    %10 = vector.broadcast %9 : vector<1x64xf32> to vector<8x64xf32>
    %c0_8 = arith.constant 0 : index
    %c0_9 = arith.constant 0 : index
    %11 = vector.load %arg10[%c0_8, %c0_9] : memref<8x64xf32, #tpu.memory_space<vmem>>, vector<8x64xf32>
    %c0_i32_10 = arith.constant 0 : i32
    %12 = arith.index_cast %c0_i32_10 : i32 to index
    %c0_11 = arith.constant 0 : index
    %c0_12 = arith.constant 0 : index
    %13 = vector.load %arg1[%12, %c0_11, %c0_12] : memref<4x8x64xf32, #tpu.memory_space<vmem>>, vector<1x8x64xf32>
    %14 = vector.shape_cast %13 : vector<1x8x64xf32> to vector<8x64xf32>
    %cst = arith.constant dense<0.000000e+00> : vector<8x192xf32>
    %15 = tpu.matmul %14, %3, %cst {dimension_numbers = #tpu.dot_dimension_numbers<[1], [0], [0], [1], [0, 0, 1, 1], [], []>} : vector<8x64xf32>, vector<64x192xf32>, vector<8x192xf32> -> vector<8x192xf32>
    %16 = arith.addf %15, %7 : vector<8x192xf32>
    %cst_13 = arith.constant dense<0.000000e+00> : vector<8x192xf32>
    %17 = tpu.matmul %11, %4, %cst_13 {dimension_numbers = #tpu.dot_dimension_numbers<[1], [0], [0], [1], [0, 0, 1, 1], [], []>} : vector<8x64xf32>, vector<64x192xf32>, vector<8x192xf32> -> vector<8x192xf32>
    %18 = vector.extract_strided_slice %16 {offsets = [0, 0], sizes = [8, 128], strides = [1, 1]} : vector<8x192xf32> to vector<8x128xf32>
    %19 = vector.extract_strided_slice %17 {offsets = [0, 0], sizes = [8, 128], strides = [1, 1]} : vector<8x192xf32> to vector<8x128xf32>
    %20 = arith.addf %18, %19 : vector<8x128xf32>
    %21 = arith.negf %20 : vector<8x128xf32>
    %22 = math.exp %21 : vector<8x128xf32>
    %cst_14 = arith.constant 1.000000e+00 : f32
    %23 = vector.broadcast %cst_14 : f32 to vector<8x128xf32>
    %24 = arith.addf %23, %22 : vector<8x128xf32>
    %25 = arith.divf %23, %24 : vector<8x128xf32>
    %26 = vector.extract_strided_slice %25 {offsets = [0, 0], sizes = [8, 64], strides = [1, 1]} : vector<8x128xf32> to vector<8x64xf32>
    %27 = vector.extract_strided_slice %25 {offsets = [0, 64], sizes = [8, 64], strides = [1, 1]} : vector<8x128xf32> to vector<8x64xf32>
    %28 = vector.extract_strided_slice %16 {offsets = [0, 128], sizes = [8, 64], strides = [1, 1]} : vector<8x192xf32> to vector<8x64xf32>
    %29 = vector.extract_strided_slice %17 {offsets = [0, 128], sizes = [8, 64], strides = [1, 1]} : vector<8x192xf32> to vector<8x64xf32>
    %30 = arith.addf %29, %10 : vector<8x64xf32>
    %31 = arith.mulf %26, %30 : vector<8x64xf32>
    %32 = arith.addf %28, %31 : vector<8x64xf32>
    %33 = math.tanh %32 : vector<8x64xf32>
    %cst_15 = arith.constant 1.000000e+00 : f32
    %34 = vector.broadcast %cst_15 : f32 to vector<8x64xf32>
    %35 = arith.subf %34, %27 : vector<8x64xf32>
    %36 = arith.mulf %35, %33 : vector<8x64xf32>
    %37 = arith.mulf %27, %11 : vector<8x64xf32>
    %38 = arith.addf %36, %37 : vector<8x64xf32>
    %39 = arith.index_cast %c0_i32_10 : i32 to index
    %c0_16 = arith.constant 0 : index
    %c0_17 = arith.constant 0 : index
    %40 = vector.load %arg8[%39, %c0_16, %c0_17] : memref<4x8x64xf32, #tpu.memory_space<vmem>>, vector<1x8x64xf32>
    %41 = vector.shape_cast %40 : vector<1x8x64xf32> to vector<8x64xf32>
    %42 = vector.shape_cast %38 : vector<8x64xf32> to vector<1x8x64xf32>
    tpu.vector_store %arg8[%39, %c0_16, %c0_17], %42 {strides = array<i32>} : memref<4x8x64xf32, #tpu.memory_space<vmem>>, vector<1x8x64xf32>,
    %c1_i32 = arith.constant 1 : i32
    %43 = arith.index_cast %c1_i32 : i32 to index
    %c0_18 = arith.constant 0 : index
    %c0_19 = arith.constant 0 : index
    %44 = vector.load %arg1[%43, %c0_18, %c0_19] : memref<4x8x64xf32, #tpu.memory_space<vmem>>, vector<1x8x64xf32>
    %45 = vector.shape_cast %44 : vector<1x8x64xf32> to vector<8x64xf32>
    %cst_20 = arith.constant dense<0.000000e+00> : vector<8x192xf32>
    %46 = tpu.matmul %45, %3, %cst_20 {dimension_numbers = #tpu.dot_dimension_numbers<[1], [0], [0], [1], [0, 0, 1, 1], [], []>} : vector<8x64xf32>, vector<64x192xf32>, vector<8x192xf32> -> vector<8x192xf32>
    %47 = arith.addf %46, %7 : vector<8x192xf32>
    %cst_21 = arith.constant dense<0.000000e+00> : vector<8x192xf32>
    %48 = tpu.matmul %38, %4, %cst_21 {dimension_numbers = #tpu.dot_dimension_numbers<[1], [0], [0], [1], [0, 0, 1, 1], [], []>} : vector<8x64xf32>, vector<64x192xf32>, vector<8x192xf32> -> vector<8x192xf32>
    %49 = vector.extract_strided_slice %47 {offsets = [0, 0], sizes = [8, 128], strides = [1, 1]} : vector<8x192xf32> to vector<8x128xf32>
    %50 = vector.extract_strided_slice %48 {offsets = [0, 0], sizes = [8, 128], strides = [1, 1]} : vector<8x192xf32> to vector<8x128xf32>
    %51 = arith.addf %49, %50 : vector<8x128xf32>
    %52 = arith.negf %51 : vector<8x128xf32>
    %53 = math.exp %52 : vector<8x128xf32>
    %cst_22 = arith.constant 1.000000e+00 : f32
    %54 = vector.broadcast %cst_22 : f32 to vector<8x128xf32>
    %55 = arith.addf %54, %53 : vector<8x128xf32>
    %56 = arith.divf %54, %55 : vector<8x128xf32>
    %57 = vector.extract_strided_slice %56 {offsets = [0, 0], sizes = [8, 64], strides = [1, 1]} : vector<8x128xf32> to vector<8x64xf32>
    %58 = vector.extract_strided_slice %56 {offsets = [0, 64], sizes = [8, 64], strides = [1, 1]} : vector<8x128xf32> to vector<8x64xf32>
    %59 = vector.extract_strided_slice %47 {offsets = [0, 128], sizes = [8, 64], strides = [1, 1]} : vector<8x192xf32> to vector<8x64xf32>
    %60 = vector.extract_strided_slice %48 {offsets = [0, 128], sizes = [8, 64], strides = [1, 1]} : vector<8x192xf32> to vector<8x64xf32>
    %61 = arith.addf %60, %10 : vector<8x64xf32>
    %62 = arith.mulf %57, %61 : vector<8x64xf32>
    %63 = arith.addf %59, %62 : vector<8x64xf32>
    %64 = math.tanh %63 : vector<8x64xf32>
    %cst_23 = arith.constant 1.000000e+00 : f32
    %65 = vector.broadcast %cst_23 : f32 to vector<8x64xf32>
    %66 = arith.subf %65, %58 : vector<8x64xf32>
    %67 = arith.mulf %66, %64 : vector<8x64xf32>
    %68 = arith.mulf %58, %38 : vector<8x64xf32>
    %69 = arith.addf %67, %68 : vector<8x64xf32>
    %70 = arith.index_cast %c1_i32 : i32 to index
    %c0_24 = arith.constant 0 : index
    %c0_25 = arith.constant 0 : index
    %71 = vector.load %arg8[%70, %c0_24, %c0_25] : memref<4x8x64xf32, #tpu.memory_space<vmem>>, vector<1x8x64xf32>
    %72 = vector.shape_cast %71 : vector<1x8x64xf32> to vector<8x64xf32>
    %73 = vector.shape_cast %69 : vector<8x64xf32> to vector<1x8x64xf32>
    tpu.vector_store %arg8[%70, %c0_24, %c0_25], %73 {strides = array<i32>} : memref<4x8x64xf32, #tpu.memory_space<vmem>>, vector<1x8x64xf32>,
    %c2_i32 = arith.constant 2 : i32
    %74 = arith.index_cast %c2_i32 : i32 to index
    %c0_26 = arith.constant 0 : index
    %c0_27 = arith.constant 0 : index
    %75 = vector.load %arg1[%74, %c0_26, %c0_27] : memref<4x8x64xf32, #tpu.memory_space<vmem>>, vector<1x8x64xf32>
    %76 = vector.shape_cast %75 : vector<1x8x64xf32> to vector<8x64xf32>
    %cst_28 = arith.constant dense<0.000000e+00> : vector<8x192xf32>
    %77 = tpu.matmul %76, %3, %cst_28 {dimension_numbers = #tpu.dot_dimension_numbers<[1], [0], [0], [1], [0, 0, 1, 1], [], []>} : vector<8x64xf32>, vector<64x192xf32>, vector<8x192xf32> -> vector<8x192xf32>
    %78 = arith.addf %77, %7 : vector<8x192xf32>
    %cst_29 = arith.constant dense<0.000000e+00> : vector<8x192xf32>
    %79 = tpu.matmul %69, %4, %cst_29 {dimension_numbers = #tpu.dot_dimension_numbers<[1], [0], [0], [1], [0, 0, 1, 1], [], []>} : vector<8x64xf32>, vector<64x192xf32>, vector<8x192xf32> -> vector<8x192xf32>
    %80 = vector.extract_strided_slice %78 {offsets = [0, 0], sizes = [8, 128], strides = [1, 1]} : vector<8x192xf32> to vector<8x128xf32>
    %81 = vector.extract_strided_slice %79 {offsets = [0, 0], sizes = [8, 128], strides = [1, 1]} : vector<8x192xf32> to vector<8x128xf32>
    %82 = arith.addf %80, %81 : vector<8x128xf32>
    %83 = arith.negf %82 : vector<8x128xf32>
    %84 = math.exp %83 : vector<8x128xf32>
    %cst_30 = arith.constant 1.000000e+00 : f32
    %85 = vector.broadcast %cst_30 : f32 to vector<8x128xf32>
    %86 = arith.addf %85, %84 : vector<8x128xf32>
    %87 = arith.divf %85, %86 : vector<8x128xf32>
    %88 = vector.extract_strided_slice %87 {offsets = [0, 0], sizes = [8, 64], strides = [1, 1]} : vector<8x128xf32> to vector<8x64xf32>
    %89 = vector.extract_strided_slice %87 {offsets = [0, 64], sizes = [8, 64], strides = [1, 1]} : vector<8x128xf32> to vector<8x64xf32>
    %90 = vector.extract_strided_slice %78 {offsets = [0, 128], sizes = [8, 64], strides = [1, 1]} : vector<8x192xf32> to vector<8x64xf32>
    %91 = vector.extract_strided_slice %79 {offsets = [0, 128], sizes = [8, 64], strides = [1, 1]} : vector<8x192xf32> to vector<8x64xf32>
    %92 = arith.addf %91, %10 : vector<8x64xf32>
    %93 = arith.mulf %88, %92 : vector<8x64xf32>
    %94 = arith.addf %90, %93 : vector<8x64xf32>
    %95 = math.tanh %94 : vector<8x64xf32>
    %cst_31 = arith.constant 1.000000e+00 : f32
    %96 = vector.broadcast %cst_31 : f32 to vector<8x64xf32>
    %97 = arith.subf %96, %89 : vector<8x64xf32>
    %98 = arith.mulf %97, %95 : vector<8x64xf32>
    %99 = arith.mulf %89, %69 : vector<8x64xf32>
    %100 = arith.addf %98, %99 : vector<8x64xf32>
    %101 = arith.index_cast %c2_i32 : i32 to index
    %c0_32 = arith.constant 0 : index
    %c0_33 = arith.constant 0 : index
    %102 = vector.load %arg8[%101, %c0_32, %c0_33] : memref<4x8x64xf32, #tpu.memory_space<vmem>>, vector<1x8x64xf32>
    %103 = vector.shape_cast %102 : vector<1x8x64xf32> to vector<8x64xf32>
    %104 = vector.shape_cast %100 : vector<8x64xf32> to vector<1x8x64xf32>
    tpu.vector_store %arg8[%101, %c0_32, %c0_33], %104 {strides = array<i32>} : memref<4x8x64xf32, #tpu.memory_space<vmem>>, vector<1x8x64xf32>,
    %c3_i32 = arith.constant 3 : i32
    %105 = arith.index_cast %c3_i32 : i32 to index
    %c0_34 = arith.constant 0 : index
    %c0_35 = arith.constant 0 : index
    %106 = vector.load %arg1[%105, %c0_34, %c0_35] : memref<4x8x64xf32, #tpu.memory_space<vmem>>, vector<1x8x64xf32>
    %107 = vector.shape_cast %106 : vector<1x8x64xf32> to vector<8x64xf32>
    %cst_36 = arith.constant dense<0.000000e+00> : vector<8x192xf32>
    %108 = tpu.matmul %107, %3, %cst_36 {dimension_numbers = #tpu.dot_dimension_numbers<[1], [0], [0], [1], [0, 0, 1, 1], [], []>} : vector<8x64xf32>, vector<64x192xf32>, vector<8x192xf32> -> vector<8x192xf32>
    %109 = arith.addf %108, %7 : vector<8x192xf32>
    %cst_37 = arith.constant dense<0.000000e+00> : vector<8x192xf32>
    %110 = tpu.matmul %100, %4, %cst_37 {dimension_numbers = #tpu.dot_dimension_numbers<[1], [0], [0], [1], [0, 0, 1, 1], [], []>} : vector<8x64xf32>, vector<64x192xf32>, vector<8x192xf32> -> vector<8x192xf32>
    %111 = vector.extract_strided_slice %109 {offsets = [0, 0], sizes = [8, 128], strides = [1, 1]} : vector<8x192xf32> to vector<8x128xf32>
    %112 = vector.extract_strided_slice %110 {offsets = [0, 0], sizes = [8, 128], strides = [1, 1]} : vector<8x192xf32> to vector<8x128xf32>
    %113 = arith.addf %111, %112 : vector<8x128xf32>
    %114 = arith.negf %113 : vector<8x128xf32>
    %115 = math.exp %114 : vector<8x128xf32>
    %cst_38 = arith.constant 1.000000e+00 : f32
    %116 = vector.broadcast %cst_38 : f32 to vector<8x128xf32>
    %117 = arith.addf %116, %115 : vector<8x128xf32>
    %118 = arith.divf %116, %117 : vector<8x128xf32>
    %119 = vector.extract_strided_slice %118 {offsets = [0, 0], sizes = [8, 64], strides = [1, 1]} : vector<8x128xf32> to vector<8x64xf32>
    %120 = vector.extract_strided_slice %118 {offsets = [0, 64], sizes = [8, 64], strides = [1, 1]} : vector<8x128xf32> to vector<8x64xf32>
    %121 = vector.extract_strided_slice %109 {offsets = [0, 128], sizes = [8, 64], strides = [1, 1]} : vector<8x192xf32> to vector<8x64xf32>
    %122 = vector.extract_strided_slice %110 {offsets = [0, 128], sizes = [8, 64], strides = [1, 1]} : vector<8x192xf32> to vector<8x64xf32>
    %123 = arith.addf %122, %10 : vector<8x64xf32>
    %124 = arith.mulf %119, %123 : vector<8x64xf32>
    %125 = arith.addf %121, %124 : vector<8x64xf32>
    %126 = math.tanh %125 : vector<8x64xf32>
    %cst_39 = arith.constant 1.000000e+00 : f32
    %127 = vector.broadcast %cst_39 : f32 to vector<8x64xf32>
    %128 = arith.subf %127, %120 : vector<8x64xf32>
    %129 = arith.mulf %128, %126 : vector<8x64xf32>
    %130 = arith.mulf %120, %100 : vector<8x64xf32>
    %131 = arith.addf %129, %130 : vector<8x64xf32>
    %132 = arith.index_cast %c3_i32 : i32 to index
    %c0_40 = arith.constant 0 : index
    %c0_41 = arith.constant 0 : index
    %133 = vector.load %arg8[%132, %c0_40, %c0_41] : memref<4x8x64xf32, #tpu.memory_space<vmem>>, vector<1x8x64xf32>
    %134 = vector.shape_cast %133 : vector<1x8x64xf32> to vector<8x64xf32>
    %135 = vector.shape_cast %131 : vector<8x64xf32> to vector<1x8x64xf32>
    tpu.vector_store %arg8[%132, %c0_40, %c0_41], %135 {strides = array<i32>} : memref<4x8x64xf32, #tpu.memory_space<vmem>>, vector<1x8x64xf32>,
    %c4_i32 = arith.constant 4 : i32
    %c0_42 = arith.constant 0 : index
    %c0_43 = arith.constant 0 : index
    %136 = vector.load %arg10[%c0_42, %c0_43] : memref<8x64xf32, #tpu.memory_space<vmem>>, vector<8x64xf32>
    tpu.vector_store %arg10[%c0_42, %c0_43], %131 {strides = array<i32>} : memref<8x64xf32, #tpu.memory_space<vmem>>, vector<8x64xf32>,
    %c1_i32_44 = arith.constant 1 : i32
    %137 = arith.cmpi eq, %arg0, %c1_i32_44 : i32
    %138 = arith.extui %137 : i1 to i32
    %c0_i32_45 = arith.constant 0 : i32
    %139 = arith.cmpi ne, %138, %c0_i32_45 : i32
    scf.if %139 {
      %c0_46 = arith.constant 0 : index
      %c0_47 = arith.constant 0 : index
      %140 = vector.load %arg10[%c0_46, %c0_47] : memref<8x64xf32, #tpu.memory_space<vmem>>, vector<8x64xf32>
      %c0_48 = arith.constant 0 : index
      %c0_49 = arith.constant 0 : index
      %141 = vector.load %arg6[%c0_48, %c0_49] : memref<64x32xf32, #tpu.memory_space<vmem>>, vector<64x32xf32>
      %cst_50 = arith.constant dense<0.000000e+00> : vector<8x32xf32>
      %142 = tpu.matmul %140, %141, %cst_50 {dimension_numbers = #tpu.dot_dimension_numbers<[1], [0], [0], [1], [0, 0, 1, 1], [], []>} : vector<8x64xf32>, vector<64x32xf32>, vector<8x32xf32> -> vector<8x32xf32>
      %c0_51 = arith.constant 0 : index
      %c0_52 = arith.constant 0 : index
      %143 = vector.load %arg7[%c0_51, %c0_52] : memref<1x32xf32, #tpu.memory_space<vmem>>, vector<1x32xf32>
      %144 = vector.broadcast %143 : vector<1x32xf32> to vector<8x32xf32>
      %145 = arith.addf %142, %144 : vector<8x32xf32>
      %146 = math.tanh %145 : vector<8x32xf32>
      %c0_53 = arith.constant 0 : index
      %c0_54 = arith.constant 0 : index
      %147 = vector.load %arg9[%c0_53, %c0_54] : memref<8x32xf32, #tpu.memory_space<vmem>>, vector<8x32xf32>
      tpu.vector_store %arg9[%c0_53, %c0_54], %146 {strides = array<i32>} : memref<8x32xf32, #tpu.memory_space<vmem>>, vector<8x32xf32>,
    } else {
    }
    return
  }
  func.func @transform_0(%arg0: i32) -> (i32, i32, i32) {
    %c0_i32 = arith.constant 0 : i32
    %c0_i32_0 = arith.constant 0 : i32
    %c0_i32_1 = arith.constant 0 : i32
    return %arg0, %c0_i32, %c0_i32_0 : i32, i32, i32
  }
  func.func @transform_1(%arg0: i32) -> (i32, i32) {
    %c0_i32 = arith.constant 0 : i32
    %c0_i32_0 = arith.constant 0 : i32
    %c0_i32_1 = arith.constant 0 : i32
    return %c0_i32, %c0_i32_0 : i32, i32
  }
  func.func @transform_2(%arg0: i32) -> (i32, i32) {
    %c0_i32 = arith.constant 0 : i32
    %c0_i32_0 = arith.constant 0 : i32
    %c0_i32_1 = arith.constant 0 : i32
    return %c0_i32, %c0_i32_0 : i32, i32
  }
  func.func @transform_3(%arg0: i32) -> (i32, i32) {
    %c0_i32 = arith.constant 0 : i32
    %c0_i32_0 = arith.constant 0 : i32
    %c0_i32_1 = arith.constant 0 : i32
    return %c0_i32, %c0_i32_0 : i32, i32
  }
  func.func @transform_4(%arg0: i32) -> (i32, i32) {
    %c0_i32 = arith.constant 0 : i32
    %c0_i32_0 = arith.constant 0 : i32
    %c0_i32_1 = arith.constant 0 : i32
    return %c0_i32, %c0_i32_0 : i32, i32
  }
  func.func @transform_5(%arg0: i32) -> (i32, i32) {
    %c0_i32 = arith.constant 0 : i32
    %c0_i32_0 = arith.constant 0 : i32
    %c0_i32_1 = arith.constant 0 : i32
    return %c0_i32, %c0_i32_0 : i32, i32
  }
  func.func @transform_6(%arg0: i32) -> (i32, i32) {
    %c0_i32 = arith.constant 0 : i32
    %c0_i32_0 = arith.constant 0 : i32
    %c0_i32_1 = arith.constant 0 : i32
    return %c0_i32, %c0_i32_0 : i32, i32
  }
  func.func @transform_7(%arg0: i32) -> (i32, i32, i32) {
    %c0_i32 = arith.constant 0 : i32
    %c0_i32_0 = arith.constant 0 : i32
    %c0_i32_1 = arith.constant 0 : i32
    return %arg0, %c0_i32, %c0_i32_0 : i32, i32, i32
  }
  func.func @transform_8(%arg0: i32) -> (i32, i32) {
    %c0_i32 = arith.constant 0 : i32
    %c0_i32_0 = arith.constant 0 : i32
    %c0_i32_1 = arith.constant 0 : i32
    return %c0_i32, %c0_i32_0 : i32, i32
  }
}

</mosaic_0001>

<llo_original>
// kernel: tpu_custom_call.1
$region0: #{tpu_custom_call.1}
  #allocation0 [shape = 'u32[]', space=smem, size = 0x4, offset = 0x4, fixed_abs, tag = 'smem constant byte address 0x4 - core index']
  #allocation1 [shape = 'u32[144,128]{1,0:T(1,128)}', space=vmem, size = 0x12000, scoped, tag = 'internal scratch']
  #allocation2 [shape = 'f32[8,64]{1,0:T(8,128)}', space=vmem, size = 0x1000, scoped, tag = 'scratch operand']
  %s0 = inlined_call_operand.vmem [shape: f32[8,8,64], index: 0, kind: input, shape index: {}]
  %s1 = inlined_call_operand.hbm [shape: f32[64,192], index: 1, kind: input, shape index: {}]
  %s2 = inlined_call_operand.hbm [shape: f32[64,192], index: 2, kind: input, shape index: {}]
  %s3 = inlined_call_operand.vmem [shape: f32[1,192], index: 3, kind: input, shape index: {}]
  %s4 = inlined_call_operand.vmem [shape: f32[1,64], index: 4, kind: input, shape index: {}]
  %s5 = inlined_call_operand.vmem [shape: f32[64,32], index: 5, kind: input, shape index: {}]
  %s6 = inlined_call_operand.vmem [shape: f32[1,32], index: 6, kind: input, shape index: {}]
  %s7 = inlined_call_operand.hbm [shape: f32[8,8,64], index: 7, kind: output, shape index: {0}]
  %s8 = inlined_call_operand.hbm [shape: f32[8,32], index: 8, kind: output, shape index: {1}]
  %9 = xla_tuple %s7, %s8
  %s10 = sld [smem:[#allocation0]]
  $region85: #{tpu_custom_call.1} parent=0
    _
  %s12 = ssub.s32 1, %s10
  %s13 = scalar_select 0, %s12, %s10
  $region1: #{tpu_custom_call.1} parent=0
    #allocation3 [shape = 'u8[65536]{0}', space=vmem, size = 0x10000, scoped, tag = 'input window, operand 1, single buffered']
    #allocation4 [shape = 's32[2]{0}', space=sflag, size = 0x8, scoped, tag = 'scoped memory for tpu_custom_call.1']
    #allocation5 [shape = 's32[2]{0}', space=sflag, size = 0x8, scoped, tag = 'scoped memory for tpu_custom_call.1']
    #allocation6 [shape = 'u8[65536]{0}', space=vmem, size = 0x10000, scoped, tag = 'input window, operand 2, single buffered']
    #allocation7 [shape = 's32[1]{0}', space=sflag, size = 0x4, scoped, tag = 'scoped memory for tpu_custom_call.1']
    #allocation8 [shape = 'u8[32768]{0}', space=vmem, size = 0x8000, scoped, tag = 'output window, operand 0']
    #allocation9 [shape = 'u8[4096]{0}', space=vmem, size = 0x1000, scoped, tag = 'output window, operand 1, single buffered']
    #allocation10 [shape = 's32[1]{0}', space=sflag, size = 0x4, scoped, tag = 'scoped memory for tpu_custom_call.1']
    %14 = vsyncpa [#allocation4], 0
    %15 = vsyncpa [#allocation7], 0
    %16 = vsyncpa [#allocation5], 0
    %s17 = scalar_lea.sflag [#allocation5], 1
    %18 = vsyncpa %s17, 0
    %19 = vsyncpa [#allocation10], 0
    loop: start=0, step=1, limit=4
    $region2: #{tpu_custom_call.1} parent=1 // loop_pre_header
      _
    $region3: #{tpu_custom_call.1} parent=1 // loop_header
      %s21 = sphi 0, %s25
      %p22 = scmp.ge.s32.totalorder %s21, 4
      %s31 = sphi 0, %s33
      %s34 = sphi 0, %s31
      %s35 = sphi 0, %s34
      %s51 = sphi 0, %s35
      %s55 = sphi 0, %s55
      %s57 = sphi 0, %s55
      %s58 = sphi 0, %s57
      %s72 = sphi 0, %s58
      %s76 = sphi 0, %s76
      %s78 = sphi 0, %s76
      %s79 = sphi 0, %s78
      %s93 = sphi 0, %s79
      %s97 = sphi 0, %s97
      %s99 = sphi 0, %s97
      %s100 = sphi 0, %s99
      %s114 = sphi 0, %s100
      %s118 = sphi 0, %s118
      %s120 = sphi 0, %s118
      %s121 = sphi 0, %s120
      %s135 = sphi 0, %s121
      %s139 = sphi 0, %s139
      %s141 = sphi 0, %s139
      %s142 = sphi 0, %s141
      %s156 = sphi 0, %s142
      %s160 = sphi 0, %s160
      %s162 = sphi 0, %s160
      %s163 = sphi 0, %s162
      %s177 = sphi 0, %s163
      %s183 = sphi 0, %s185
      %s186 = sphi 0, %s183
      %s187 = sphi 0, %s186
      %s203 = sphi 0, %s187
      %s207 = sphi 0, %s207
      %s209 = sphi 0, %s207
      %s210 = sphi 0, %s209
      %s224 = sphi 0, %s210
    $region4: #{tpu_custom_call.1} parent=1 // loop_header_branch
      %24 = sbr.rel (%p22) target = $region8
    $region5: #{tpu_custom_call.1} parent=1 // loop_body
      %s26 = ssub.s32 %s21, 1
      %s27 = ssub.s32 %s21, 2
      %s28 = sadd.s32 %s21, 1
      %s29 = ssub.s32 %s21, %s28
      %p30 = scmp.eq.s32.totalorder %s29, 0
      %s32 = sadd.s32 %s31, 1
      %s33 = scalar_select %p30, %s31, %s32
      %p36 = pneg %p30
      %p37 = scmp.eq.s32.totalorder %s21, 1
      %p38 = por %p36, %p37
      %p39 = scmp.ne.s32.totalorder %s31, %s34
      %p40 = scmp.eq.s32.totalorder %s21, 0
      %p41 = por %p39, %p40
      %p42 = scmp.ne.s32.totalorder %s31, %s34
      %p43 = scmp.eq.s32.totalorder %s26, 1
      %p44 = por %p42, %p43
      %p45 = scmp.ne.s32.totalorder %s34, %s35
      %p46 = scmp.eq.s32.totalorder %s26, 0
      %p47 = por %p45, %p46
      %p48 = scmp.ne.s32.totalorder %s34, %s35
      %p49 = scmp.eq.s32.totalorder %s27, 1
      %p50 = por %p48, %p49
      %p52 = scmp.ne.s32.totalorder %s35, %s51
      %p53 = scmp.eq.s32.totalorder %s27, 0
      %p54 = por %p52, %p53
      %s56 = sadd.s32 %s55, 1
      %p59 = scmp.eq.s32.totalorder %s21, 1
      %p60 = scmp.ne.s32.totalorder %s55, %s57
      %p61 = scmp.eq.s32.totalorder %s21, 0
      %p62 = por %p60, %p61
      %p63 = scmp.ne.s32.totalorder %s55, %s57
      %p64 = scmp.eq.s32.totalorder %s26, 1
      %p65 = por %p63, %p64
      %p66 = scmp.ne.s32.totalorder %s57, %s58
      %p67 = scmp.eq.s32.totalorder %s26, 0
      %p68 = por %p66, %p67
      %p69 = scmp.ne.s32.totalorder %s57, %s58
      %p70 = scmp.eq.s32.totalorder %s27, 1
      %p71 = por %p69, %p70
      %p73 = scmp.ne.s32.totalorder %s58, %s72
      %p74 = scmp.eq.s32.totalorder %s27, 0
      %p75 = por %p73, %p74
      %s77 = sadd.s32 %s76, 1
      %p80 = scmp.eq.s32.totalorder %s21, 1
      %p81 = scmp.ne.s32.totalorder %s76, %s78
      %p82 = scmp.eq.s32.totalorder %s21, 0
      %p83 = por %p81, %p82
      %p84 = scmp.ne.s32.totalorder %s76, %s78
      %p85 = scmp.eq.s32.totalorder %s26, 1
      %p86 = por %p84, %p85
      %p87 = scmp.ne.s32.totalorder %s78, %s79
      %p88 = scmp.eq.s32.totalorder %s26, 0
      %p89 = por %p87, %p88
      %p90 = scmp.ne.s32.totalorder %s78, %s79
      %p91 = scmp.eq.s32.totalorder %s27, 1
      %p92 = por %p90, %p91
      %p94 = scmp.ne.s32.totalorder %s79, %s93
      %p95 = scmp.eq.s32.totalorder %s27, 0
      %p96 = por %p94, %p95
      %s98 = sadd.s32 %s97, 1
      %p101 = scmp.eq.s32.totalorder %s21, 1
      %p102 = scmp.ne.s32.totalorder %s97, %s99
      %p103 = scmp.eq.s32.totalorder %s21, 0
      %p104 = por %p102, %p103
      %p105 = scmp.ne.s32.totalorder %s97, %s99
      %p106 = scmp.eq.s32.totalorder %s26, 1
      %p107 = por %p105, %p106
      %p108 = scmp.ne.s32.totalorder %s99, %s100
      %p109 = scmp.eq.s32.totalorder %s26, 0
      %p110 = por %p108, %p109
      %p111 = scmp.ne.s32.totalorder %s99, %s100
      %p112 = scmp.eq.s32.totalorder %s27, 1
      %p113 = por %p111, %p112
      %p115 = scmp.ne.s32.totalorder %s100, %s114
      %p116 = scmp.eq.s32.totalorder %s27, 0
      %p117 = por %p115, %p116
      %s119 = sadd.s32 %s118, 1
      %p122 = scmp.eq.s32.totalorder %s21, 1
      %p123 = scmp.ne.s32.totalorder %s118, %s120
      %p124 = scmp.eq.s32.totalorder %s21, 0
      %p125 = por %p123, %p124
      %p126 = scmp.ne.s32.totalorder %s118, %s120
      %p127 = scmp.eq.s32.totalorder %s26, 1
      %p128 = por %p126, %p127
      %p129 = scmp.ne.s32.totalorder %s120, %s121
      %p130 = scmp.eq.s32.totalorder %s26, 0
      %p131 = por %p129, %p130
      %p132 = scmp.ne.s32.totalorder %s120, %s121
      %p133 = scmp.eq.s32.totalorder %s27, 1
      %p134 = por %p132, %p133
      %p136 = scmp.ne.s32.totalorder %s121, %s135
      %p137 = scmp.eq.s32.totalorder %s27, 0
      %p138 = por %p136, %p137
      %s140 = sadd.s32 %s139, 1
      %p143 = scmp.eq.s32.totalorder %s21, 1
      %p144 = scmp.ne.s32.totalorder %s139, %s141
      %p145 = scmp.eq.s32.totalorder %s21, 0
      %p146 = por %p144, %p145
      %p147 = scmp.ne.s32.totalorder %s139, %s141
      %p148 = scmp.eq.s32.totalorder %s26, 1
      %p149 = por %p147, %p148
      %p150 = scmp.ne.s32.totalorder %s141, %s142
      %p151 = scmp.eq.s32.totalorder %s26, 0
      %p152 = por %p150, %p151
      %p153 = scmp.ne.s32.totalorder %s141, %s142
      %p154 = scmp.eq.s32.totalorder %s27, 1
      %p155 = por %p153, %p154
      %p157 = scmp.ne.s32.totalorder %s142, %s156
      %p158 = scmp.eq.s32.totalorder %s27, 0
      %p159 = por %p157, %p158
      %s161 = sadd.s32 %s160, 1
      %p164 = scmp.eq.s32.totalorder %s21, 1
      %p165 = scmp.ne.s32.totalorder %s160, %s162
      %p166 = scmp.eq.s32.totalorder %s21, 0
      %p167 = por %p165, %p166
      %p168 = scmp.ne.s32.totalorder %s160, %s162
      %p169 = scmp.eq.s32.totalorder %s26, 1
      %p170 = por %p168, %p169
      %p171 = scmp.ne.s32.totalorder %s162, %s163
      %p172 = scmp.eq.s32.totalorder %s26, 0
      %p173 = por %p171, %p172
      %p174 = scmp.ne.s32.totalorder %s162, %s163
      %p175 = scmp.eq.s32.totalorder %s27, 1
      %p176 = por %p174, %p175
      %p178 = scmp.ne.s32.totalorder %s163, %s177
      %p179 = scmp.eq.s32.totalorder %s27, 0
      %p180 = por %p178, %p179
      %s181 = ssub.s32 %s21, %s28
      %p182 = scmp.eq.s32.totalorder %s181, 0
      %s184 = sadd.s32 %s183, 1
      %s185 = scalar_select %p182, %s183, %s184
      %p188 = pneg %p182
      %p189 = scmp.eq.s32.totalorder %s21, 1
      %p190 = por %p188, %p189
      %p191 = scmp.ne.s32.totalorder %s183, %s186
      %p192 = scmp.eq.s32.totalorder %s21, 0
      %p193 = por %p191, %p192
      %p194 = scmp.ne.s32.totalorder %s183, %s186
      %p195 = scmp.eq.s32.totalorder %s26, 1
      %p196 = por %p194, %p195
      %p197 = scmp.ne.s32.totalorder %s186, %s187
      %p198 = scmp.eq.s32.totalorder %s26, 0
      %p199 = por %p197, %p198
      %p200 = scmp.ne.s32.totalorder %s186, %s187
      %p201 = scmp.eq.s32.totalorder %s27, 1
      %p202 = por %p200, %p201
      %p204 = scmp.ne.s32.totalorder %s187, %s203
      %p205 = scmp.eq.s32.totalorder %s27, 0
      %p206 = por %p204, %p205
      %s208 = sadd.s32 %s207, 1
      %p211 = scmp.eq.s32.totalorder %s21, 1
      %p212 = scmp.ne.s32.totalorder %s207, %s209
      %p213 = scmp.eq.s32.totalorder %s21, 0
      %p214 = por %p212, %p213
      %p215 = scmp.ne.s32.totalorder %s207, %s209
      %p216 = scmp.eq.s32.totalorder %s26, 1
      %p217 = por %p215, %p216
      %p218 = scmp.ne.s32.totalorder %s209, %s210
      %p219 = scmp.eq.s32.totalorder %s26, 0
      %p220 = por %p218, %p219
      %p221 = scmp.ne.s32.totalorder %s209, %s210
      %p222 = scmp.eq.s32.totalorder %s27, 1
      %p223 = por %p221, %p222
      %p225 = scmp.ne.s32.totalorder %s210, %s224
      %p226 = scmp.eq.s32.totalorder %s27, 0
      %p227 = por %p225, %p226
      %p228 = scmp.le.s32.totalorder 1, %s21
      %p229 = scmp.lt.s32.totalorder %s21, 3
      %p230 = pnand %p228, %p229
      %p231 = pneg %p230
      // Predicated region
      $region9: #{tpu_custom_call.1} parent=5 // pred_check
        _
      $region10: #{tpu_custom_call.1} parent=5 // pred_check_branch
        %233 = sbr.rel (%p230) target = $region12
      $region11: #{tpu_custom_call.1} parent=5 // pred_region
        %s234 = ssub.s32 %s21, 1
        // Predicated region
        $region13: #{tpu_custom_call.1} parent=11 // pred_check
          %p235 = pneg %p68
        $region14: #{tpu_custom_call.1} parent=11 // pred_check_branch
          %237 = sbr.rel (%p235) target = $region16
        $region15: #{tpu_custom_call.1} parent=11 // pred_region
          %s239 = ssub.s32 2048, 2048
          %240 = vsyncadd [#allocation4], %s239
          %s241 = sshll.u32 [#allocation3], 4
          %s242 = int_to_ptr.vmem [resolvable:$true] %s241
          %247 = dma.hbm_to_vmem [thread:$0]  %s1, 2048, %s242, [#allocation4], 256, 256, 16
        $region16: #{tpu_custom_call.1} parent=11 // pred_fallthru
          _
        // Predicated region
        $region17: #{tpu_custom_call.1} parent=11 // pred_check
          %p248 = pneg %p89
        $region18: #{tpu_custom_call.1} parent=11 // pred_check_branch
          %250 = sbr.rel (%p248) target = $region20
        $region19: #{tpu_custom_call.1} parent=11 // pred_region
          %s252 = ssub.s32 2048, 2048
          %253 = vsyncadd [#allocation7], %s252
          %s254 = sshll.u32 [#allocation6], 4
          %s255 = int_to_ptr.vmem [resolvable:$true] %s254
          %260 = dma.hbm_to_vmem [thread:$0]  %s2, 2048, %s255, [#allocation7], 256, 256, 16
        $region20: #{tpu_custom_call.1} parent=11 // pred_fallthru
          _
        // Predicated region
        $region21: #{tpu_custom_call.1} parent=11 // pred_check
          %p261 = pneg %p110
        $region22: #{tpu_custom_call.1} parent=11 // pred_check_branch
          %263 = sbr.rel (%p261) target = $region24
        $region23: #{tpu_custom_call.1} parent=11 // pred_region
          _
        $region24: #{tpu_custom_call.1} parent=11 // pred_fallthru
          _
        // Predicated region
        $region25: #{tpu_custom_call.1} parent=11 // pred_check
          %p264 = pneg %p131
        $region26: #{tpu_custom_call.1} parent=11 // pred_check_branch
          %266 = sbr.rel (%p264) target = $region28
        $region27: #{tpu_custom_call.1} parent=11 // pred_region
          _
        $region28: #{tpu_custom_call.1} parent=11 // pred_fallthru
          _
        // Predicated region
        $region29: #{tpu_custom_call.1} parent=11 // pred_check
          %p267 = pneg %p152
        $region30: #{tpu_custom_call.1} parent=11 // pred_check_branch
          %269 = sbr.rel (%p267) target = $region32
        $region31: #{tpu_custom_call.1} parent=11 // pred_region
          _
        $region32: #{tpu_custom_call.1} parent=11 // pred_fallthru
          _
        // Predicated region
        $region33: #{tpu_custom_call.1} parent=11 // pred_check
          %p270 = pneg %p173
        $region34: #{tpu_custom_call.1} parent=11 // pred_check_branch
          %272 = sbr.rel (%p270) target = $region36
        $region35: #{tpu_custom_call.1} parent=11 // pred_region
          _
        $region36: #{tpu_custom_call.1} parent=11 // pred_fallthru
          _
      $region12: #{tpu_custom_call.1} parent=5 // pred_fallthru
        _
      %p273 = scmp.lt.s32.totalorder %s21, 2
      // Predicated region
      $region37: #{tpu_custom_call.1} parent=5 // pred_check
        %p274 = pneg %p273
      $region38: #{tpu_custom_call.1} parent=5 // pred_check_branch
        %276 = sbr.rel (%p274) target = $region40
      $region39: #{tpu_custom_call.1} parent=5 // pred_region
        // Predicated region
        $region41: #{tpu_custom_call.1} parent=39 // pred_check
          %p277 = pneg %p41
        $region42: #{tpu_custom_call.1} parent=39 // pred_check_branch
          %279 = sbr.rel (%p277) target = $region44
        $region43: #{tpu_custom_call.1} parent=39 // pred_region
          %s280 = smul.u32 4, %s21
          %p281 = scmp.lt.s32.totalorder %s280, 7
          %s282 = scalar_select %p281, %s280, 7
          %s283 = smul.addr %s282, 8
          %s284 = scalar_lea.vmem %s0, %s283
          %s285 = smul.u32 4, %s21
        $region44: #{tpu_custom_call.1} parent=39 // pred_fallthru
          _
      $region40: #{tpu_custom_call.1} parent=5 // pred_fallthru
        _
      %p286 = scmp.le.s32.totalorder 1, %s21
      %p287 = scmp.lt.s32.totalorder %s21, 3
      %p288 = pnand %p286, %p287
      %p289 = pneg %p288
      // Predicated region
      $region45: #{tpu_custom_call.1} parent=5 // pred_check
        _
      $region46: #{tpu_custom_call.1} parent=5 // pred_check_branch
        %291 = sbr.rel (%p288) target = $region48
      $region47: #{tpu_custom_call.1} parent=5 // pred_region
        %s292 = ssub.s32 %s21, 1
        // Predicated region
        $region49: #{tpu_custom_call.1} parent=47 // pred_check
          %p293 = pneg %p68
        $region50: #{tpu_custom_call.1} parent=47 // pred_check_branch
          %295 = sbr.rel (%p293) target = $region52
        $region51: #{tpu_custom_call.1} parent=47 // pred_region
          %296 = dma.done [#allocation4], 2048
        $region52: #{tpu_custom_call.1} parent=47 // pred_fallthru
          _
        // Predicated region
        $region53: #{tpu_custom_call.1} parent=47 // pred_check
          %p297 = pneg %p89
        $region54: #{tpu_custom_call.1} parent=47 // pred_check_branch
          %299 = sbr.rel (%p297) target = $region56
        $region55: #{tpu_custom_call.1} parent=47 // pred_region
          %300 = dma.done [#allocation7], 2048
        $region56: #{tpu_custom_call.1} parent=47 // pred_fallthru
          _
        %s301 = smul.u32 4, %s26
        %p302 = scmp.lt.s32.totalorder %s301, 7
        %s303 = scalar_select %p302, %s301, 7
        %s304 = smul.addr %s303, 8
        %s305 = scalar_lea.vmem %s0, %s304
        %p306 = pneg %p47
        %p307 = pneg %p44
        %p308 = pneg %p68
        %p309 = pneg %p65
        %p310 = pneg %p89
        %p311 = pneg %p86
        %p312 = pneg %p110
        %p313 = pneg %p107
        %p314 = pneg %p131
        %p315 = pneg %p128
        %p316 = pneg %p152
        %p317 = pneg %p149
        %p318 = pneg %p173
        %p319 = pneg %p170
        %p320 = pneg %p199
        %p321 = pneg %p196
        %s322 = sand.u32 %s186, 1
        %s323 = scalar_lea.sflag [#allocation5], %s322
        %s324 = sand.u32 %s186, 1
        %s325 = smul.addr %s324, 32
        %s326 = scalar_lea.vmem [#allocation8], %s325
        %p327 = pneg %p220
        %p328 = pneg %p217
        %s329 = smul.u32 4, %s26
        %p330 = scmp.lt.s32.totalorder %s329, 7
        %s331 = scalar_select %p330, %s329, 7
        %s332 = smul.addr %s331, 8
        %s333 = scalar_lea.vmem %s0, %s332
        %s334 = smul.u32 4, %s26
        %s335 = smul.u32 4, %s26
        %p336 = scmp.eq.s32.totalorder %s26, 0
        // Predicated region
        $region57: #{tpu_custom_call.1} parent=47 // pred_check
          %p337 = pneg %p336
        $region58: #{tpu_custom_call.1} parent=47 // pred_check_branch
          %339 = sbr.rel (%p337) target = $region60
        $region59: #{tpu_custom_call.1} parent=47 // pred_region
          %vm340 = vcmask 523264
          %341 = vst.msk [vmem:[#allocation2] sm:$0xff] %vm340, 0.0
        $region60: #{tpu_custom_call.1} parent=47 // pred_fallthru
          _
        %v342 = vld [vmem:[#allocation3] sm:$0xff]
        %v343 = vld [vmem:[#allocation3 + $0x8] sm:$0xff]
        %v344 = vld [vmem:[#allocation3 + $0x10] sm:$0xff]
        %v345 = vld [vmem:[#allocation3 + $0x18] sm:$0xff]
        %v346 = vld [vmem:[#allocation3 + $0x20] sm:$0xff]
        %v347 = vld [vmem:[#allocation3 + $0x28] sm:$0xff]
        %v348 = vld [vmem:[#allocation3 + $0x30] sm:$0xff]
        %v349 = vld [vmem:[#allocation3 + $0x38] sm:$0xff]
        %v350 = vld [vmem:[#allocation3 + $0x40] sm:$0xff]
        %v351 = vld [vmem:[#allocation3 + $0x48] sm:$0xff]
        %v352 = vld [vmem:[#allocation3 + $0x50] sm:$0xff]
        %v353 = vld [vmem:[#allocation3 + $0x58] sm:$0xff]
        %v354 = vld [vmem:[#allocation3 + $0x60] sm:$0xff]
        %v355 = vld [vmem:[#allocation3 + $0x68] sm:$0xff]
        %v356 = vld [vmem:[#allocation3 + $0x70] sm:$0xff]
        %v357 = vld [vmem:[#allocation3 + $0x78] sm:$0xff]
        %v358 = vld [vmem:[#allocation6] sm:$0xff]
        %v359 = vld [vmem:[#allocation6 + $0x8] sm:$0xff]
        %v360 = vld [vmem:[#allocation6 + $0x10] sm:$0xff]
        %v361 = vld [vmem:[#allocation6 + $0x18] sm:$0xff]
        %v362 = vld [vmem:[#allocation6 + $0x20] sm:$0xff]
        %v363 = vld [vmem:[#allocation6 + $0x28] sm:$0xff]
        %v364 = vld [vmem:[#allocation6 + $0x30] sm:$0xff]
        %v365 = vld [vmem:[#allocation6 + $0x38] sm:$0xff]
        %v366 = vld [vmem:[#allocation6 + $0x40] sm:$0xff]
        %v367 = vld [vmem:[#allocation6 + $0x48] sm:$0xff]
        %v368 = vld [vmem:[#allocation6 + $0x50] sm:$0xff]
        %v369 = vld [vmem:[#allocation6 + $0x58] sm:$0xff]
        %v370 = vld [vmem:[#allocation6 + $0x60] sm:$0xff]
        %v371 = vld [vmem:[#allocation6 + $0x68] sm:$0xff]
        %v372 = vld [vmem:[#allocation6 + $0x70] sm:$0xff]
        %v373 = vld [vmem:[#allocation6 + $0x78] sm:$0xff]
        %v374 = vld [vmem:[%s3] sm:$0x3]
        %v376 = vlaneseq
        %v377 = vshrl.u32 %v376, 7
        %v378 = vsub.s32 0, %v377
        %v379 = vrot.slane %v374, %v378
        %v380 = vlaneseq
        %v381 = vshrl.u32 %v380, 7
        %v382 = vsub.s32 1, %v381
        %v383 = vrot.slane %v374, %v382
        %v386 = vld [vmem:[%s4] sm:$0x1]
        %v388 = vlaneseq
        %v389 = vshrl.u32 %v388, 7
        %v390 = vsub.s32 0, %v389
        %v391 = vrot.slane %v386, %v390
        %v393 = vld [vmem:[#allocation2] sm:$0xff]
        %v394 = vld [vmem:[%s333] sm:$0xff]
        %vm395 = vcmask 523264
        %v397 = vsel %vm395, %v394, 0
        %399 = vmatprep.subr.mxu0 %v343
        %400 = vmatpush1.msra.mxu0 %v342
        %401 = vmatprep.subr.mxu0 %v345
        %402 = vmatpush1.msra.mxu0 %v344
        %403 = vmatprep.subr.mxu0 %v347
        %404 = vmatpush1.msra.mxu0 %v346
        %405 = vmatprep.subr.mxu0 %v349
        %406 = vmatpush1.msra.mxu0 %v348
        %407 = vmatprep.subr.mxu0 %v351
        %408 = vmatpush1.msra.mxu0 %v350
        %409 = vmatprep.subr.mxu0 %v353
        %410 = vmatpush1.msra.mxu0 %v352
        %411 = vmatprep.subr.mxu0 %v355
        %412 = vmatpush1.msra.mxu0 %v354
        %413 = vmatprep.subr.mxu0 %v357
        %414 = vmatpush1.msra.mxu0 %v356
        %415 = vmatprep.subr.mxu0 0.0
        %416 = vmatpush1.msra.mxu0 0.0
        %417 = vmatprep.subr.mxu0 0.0
        %418 = vmatpush1.msra.mxu0 0.0
        %419 = vmatprep.subr.mxu0 0.0
        %420 = vmatpush1.msra.mxu0 0.0
        %421 = vmatprep.subr.mxu0 0.0
        %422 = vmatpush1.msra.mxu0 0.0
        %423 = vmatprep.subr.mxu0 0.0
        %424 = vmatpush1.msra.mxu0 0.0
        %425 = vmatprep.subr.mxu0 0.0
        %426 = vmatpush1.msra.mxu0 0.0
        %427 = vmatprep.subr.mxu0 0.0
        %428 = vmatpush1.msra.mxu0 0.0
        %429 = vmatprep.subr.mxu0 0.0
        %430 = vmatpush1.msra.mxu0 0.0
        %431 = vmatprep.subr.mxu0 0.0
        %432 = vmatpush1.msra.mxu0 0.0
        %433 = vmatprep.subr.mxu0 0.0
        %434 = vmatpush1.msra.mxu0 0.0
        %435 = vmatprep.subr.mxu0 0.0
        %436 = vmatpush1.msra.mxu0 0.0
        %437 = vmatprep.subr.mxu0 0.0
        %438 = vmatpush1.msra.mxu0 0.0
        %439 = vmatprep.subr.mxu0 0.0
        %440 = vmatpush1.msra.mxu0 0.0
        %441 = vmatprep.subr.mxu0 0.0
        %442 = vmatpush1.msra.mxu0 0.0
        %443 = vmatprep.subr.mxu0 0.0
        %444 = vmatpush1.msra.mxu0 0.0
        %445 = vmatprep.subr.mxu0 0.0
        %446 = vmatpush1.msra.mxu0 0.0
        %447 = vmatprep.subr.mxu0 0.0
        %448 = vmatpush1.msra.mxu0 0.0
        %449 = vmatprep.subr.mxu0 0.0
        %450 = vmatpush1.msra.mxu0 0.0
        %451 = vmatprep.subr.mxu0 0.0
        %452 = vmatpush1.msra.mxu0 0.0
        %453 = vmatprep.subr.mxu0 0.0
        %454 = vmatpush1.msra.mxu0 0.0
        %455 = vmatprep.subr.mxu0 0.0
        %456 = vmatpush1.msra.mxu0 0.0
        %457 = vmatprep.subr.mxu0 0.0
        %458 = vmatpush1.msra.mxu0 0.0
        %459 = vmatprep.subr.mxu0 0.0
        %460 = vmatpush1.msra.mxu0 0.0
        %461 = vmatprep.subr.mxu0 0.0
        %462 = vmatpush1.msra.mxu0 0.0
        %463 = vmatprep.mubr.f32.mxu0 0.0
        %464 = vmatmul.mubr.f32.gmra.mrb[0].mxu0 %v397
        %v465 = vpop.f32.mrb[0].mxu0
        %v466 = vadd.f32 %v379, %v465
        %v467 = vpop.f32.mrb[0].mxu0
        %v468 = vadd.f32 %v383, %v467
        %469 = vdwg.mxu0
        %v471 = vsel %vm395, %v393, 0
        %473 = vmatprep.subr.mxu0 %v359
        %474 = vmatpush1.msra.mxu0 %v358
        %475 = vmatprep.subr.mxu0 %v361
        %476 = vmatpush1.msra.mxu0 %v360
        %477 = vmatprep.subr.mxu0 %v363
        %478 = vmatpush1.msra.mxu0 %v362
        %479 = vmatprep.subr.mxu0 %v365
        %480 = vmatpush1.msra.mxu0 %v364
        %481 = vmatprep.subr.mxu0 %v367
        %482 = vmatpush1.msra.mxu0 %v366
        %483 = vmatprep.subr.mxu0 %v369
        %484 = vmatpush1.msra.mxu0 %v368
        %485 = vmatprep.subr.mxu0 %v371
        %486 = vmatpush1.msra.mxu0 %v370
        %487 = vmatprep.subr.mxu0 %v373
        %488 = vmatpush1.msra.mxu0 %v372
        %489 = vmatprep.subr.mxu0 0.0
        %490 = vmatpush1.msra.mxu0 0.0
        %491 = vmatprep.subr.mxu0 0.0
        %492 = vmatpush1.msra.mxu0 0.0
        %493 = vmatprep.subr.mxu0 0.0
        %494 = vmatpush1.msra.mxu0 0.0
        %495 = vmatprep.subr.mxu0 0.0
        %496 = vmatpush1.msra.mxu0 0.0
        %497 = vmatprep.subr.mxu0 0.0
        %498 = vmatpush1.msra.mxu0 0.0
        %499 = vmatprep.subr.mxu0 0.0
        %500 = vmatpush1.msra.mxu0 0.0
        %501 = vmatprep.subr.mxu0 0.0
        %502 = vmatpush1.msra.mxu0 0.0
        %503 = vmatprep.subr.mxu0 0.0
        %504 = vmatpush1.msra.mxu0 0.0
        %505 = vmatprep.subr.mxu0 0.0
        %506 = vmatpush1.msra.mxu0 0.0
        %507 = vmatprep.subr.mxu0 0.0
        %508 = vmatpush1.msra.mxu0 0.0
        %509 = vmatprep.subr.mxu0 0.0
        %510 = vmatpush1.msra.mxu0 0.0
        %511 = vmatprep.subr.mxu0 0.0
        %512 = vmatpush1.msra.mxu0 0.0
        %513 = vmatprep.subr.mxu0 0.0
        %514 = vmatpush1.msra.mxu0 0.0
        %515 = vmatprep.subr.mxu0 0.0
        %516 = vmatpush1.msra.mxu0 0.0
        %517 = vmatprep.subr.mxu0 0.0
        %518 = vmatpush1.msra.mxu0 0.0
        %519 = vmatprep.subr.mxu0 0.0
        %520 = vmatpush1.msra.mxu0 0.0
        %521 = vmatprep.subr.mxu0 0.0
        %522 = vmatpush1.msra.mxu0 0.0
        %523 = vmatprep.subr.mxu0 0.0
        %524 = vmatpush1.msra.mxu0 0.0
        %525 = vmatprep.subr.mxu0 0.0
        %526 = vmatpush1.msra.mxu0 0.0
        %527 = vmatprep.subr.mxu0 0.0
        %528 = vmatpush1.msra.mxu0 0.0
        %529 = vmatprep.subr.mxu0 0.0
        %530 = vmatpush1.msra.mxu0 0.0
        %531 = vmatprep.subr.mxu0 0.0
        %532 = vmatpush1.msra.mxu0 0.0
        %533 = vmatprep.subr.mxu0 0.0
        %534 = vmatpush1.msra.mxu0 0.0
        %535 = vmatprep.subr.mxu0 0.0
        %536 = vmatpush1.msra.mxu0 0.0
        %537 = vmatprep.mubr.f32.mxu0 0.0
        %538 = vmatmul.mubr.f32.gmra.mrb[0].mxu0 %v471
        %v539 = vpop.f32.mrb[0].mxu0
        %v540 = vadd.f32 0.0, %v539
        %v541 = vpop.f32.mrb[0].mxu0
        %v542 = vadd.f32 0.0, %v541
        %543 = vdwg.mxu0
        %v544 = vadd.f32 %v466, %v540
        %v545 = vxor.u32 %v544, 2147483648
        %v546 = vmul.f32 %v545, 1.442695
        %v547 = vpow.pop %v546
        %v548 = vadd.f32 %v547, 1.0
        %v549 = vrcp.pop %v548
        %v550 = vmul.f32 1.0, %v549
        %v551 = vadd.f32 %v542, %v391
        %v552 = vmul.f32 %v550, %v551
        %v553 = vadd.f32 %v468, %v552
        %v554 = vtanh.pop %v553
        %v555 = vsub.f32 1.0, %v550
        %557 = vrot.lane.b32.xlu0 %v554, 64
        %v558 = vpop.permute.xlu0 %557
        %v560 = vmul.f32 %v555, %v558
        %561 = vrot.lane.b32.xlu0 %v393, 64
        %v562 = vpop.permute.xlu0 %561
        %v564 = vmul.f32 %v550, %v562
        %v565 = vadd.f32 %v560, %v564
        %567 = vrot.lane.b32.xlu0 %v565, 64
        %v568 = vpop.permute.xlu0 %567
        %570 = vst.msk [vmem:[%s326] sm:$0xff] %vm395, %v568
        %s571 = scalar_lea.vmem %s333, 8
        %v572 = vld [vmem:[%s571] sm:$0xff]
        %v574 = vsel %vm395, %v572, 0
        %576 = vmatprep.subr.mxu0 %v343
        %577 = vmatpush1.msra.mxu0 %v342
        %578 = vmatprep.subr.mxu0 %v345
        %579 = vmatpush1.msra.mxu0 %v344
        %580 = vmatprep.subr.mxu0 %v347
        %581 = vmatpush1.msra.mxu0 %v346
        %582 = vmatprep.subr.mxu0 %v349
        %583 = vmatpush1.msra.mxu0 %v348
        %584 = vmatprep.subr.mxu0 %v351
        %585 = vmatpush1.msra.mxu0 %v350
        %586 = vmatprep.subr.mxu0 %v353
        %587 = vmatpush1.msra.mxu0 %v352
        %588 = vmatprep.subr.mxu0 %v355
        %589 = vmatpush1.msra.mxu0 %v354
        %590 = vmatprep.subr.mxu0 %v357
        %591 = vmatpush1.msra.mxu0 %v356
        %592 = vmatprep.subr.mxu0 0.0
        %593 = vmatpush1.msra.mxu0 0.0
        %594 = vmatprep.subr.mxu0 0.0
        %595 = vmatpush1.msra.mxu0 0.0
        %596 = vmatprep.subr.mxu0 0.0
        %597 = vmatpush1.msra.mxu0 0.0
        %598 = vmatprep.subr.mxu0 0.0
        %599 = vmatpush1.msra.mxu0 0.0
        %600 = vmatprep.subr.mxu0 0.0
        %601 = vmatpush1.msra.mxu0 0.0
        %602 = vmatprep.subr.mxu0 0.0
        %603 = vmatpush1.msra.mxu0 0.0
        %604 = vmatprep.subr.mxu0 0.0
        %605 = vmatpush1.msra.mxu0 0.0
        %606 = vmatprep.subr.mxu0 0.0
        %607 = vmatpush1.msra.mxu0 0.0
        %608 = vmatprep.subr.mxu0 0.0
        %609 = vmatpush1.msra.mxu0 0.0
        %610 = vmatprep.subr.mxu0 0.0
        %611 = vmatpush1.msra.mxu0 0.0
        %612 = vmatprep.subr.mxu0 0.0
        %613 = vmatpush1.msra.mxu0 0.0
        %614 = vmatprep.subr.mxu0 0.0
        %615 = vmatpush1.msra.mxu0 0.0
        %616 = vmatprep.subr.mxu0 0.0
        %617 = vmatpush1.msra.mxu0 0.0
        %618 = vmatprep.subr.mxu0 0.0
        %619 = vmatpush1.msra.mxu0 0.0
        %620 = vmatprep.subr.mxu0 0.0
        %621 = vmatpush1.msra.mxu0 0.0
        %622 = vmatprep.subr.mxu0 0.0
        %623 = vmatpush1.msra.mxu0 0.0
        %624 = vmatprep.subr.mxu0 0.0
        %625 = vmatpush1.msra.mxu0 0.0
        %626 = vmatprep.subr.mxu0 0.0
        %627 = vmatpush1.msra.mxu0 0.0
        %628 = vmatprep.subr.mxu0 0.0
        %629 = vmatpush1.msra.mxu0 0.0
        %630 = vmatprep.subr.mxu0 0.0
        %631 = vmatpush1.msra.mxu0 0.0
        %632 = vmatprep.subr.mxu0 0.0
        %633 = vmatpush1.msra.mxu0 0.0
        %634 = vmatprep.subr.mxu0 0.0
        %635 = vmatpush1.msra.mxu0 0.0
        %636 = vmatprep.subr.mxu0 0.0
        %637 = vmatpush1.msra.mxu0 0.0
        %638 = vmatprep.subr.mxu0 0.0
        %639 = vmatpush1.msra.mxu0 0.0
        %640 = vmatprep.mubr.f32.mxu0 0.0
        %641 = vmatmul.mubr.f32.gmra.mrb[0].mxu0 %v574
        %v642 = vpop.f32.mrb[0].mxu0
        %v643 = vadd.f32 %v379, %v642
        %v644 = vpop.f32.mrb[0].mxu0
        %v645 = vadd.f32 %v383, %v644
        %646 = vdwg.mxu0
        %v647 = vsel %vm395, %v568, 0
        %649 = vmatprep.subr.mxu0 %v359
        %650 = vmatpush1.msra.mxu0 %v358
        %651 = vmatprep.subr.mxu0 %v361
        %652 = vmatpush1.msra.mxu0 %v360
        %653 = vmatprep.subr.mxu0 %v363
        %654 = vmatpush1.msra.mxu0 %v362
        %655 = vmatprep.subr.mxu0 %v365
        %656 = vmatpush1.msra.mxu0 %v364
        %657 = vmatprep.subr.mxu0 %v367
        %658 = vmatpush1.msra.mxu0 %v366
        %659 = vmatprep.subr.mxu0 %v369
        %660 = vmatpush1.msra.mxu0 %v368
        %661 = vmatprep.subr.mxu0 %v371
        %662 = vmatpush1.msra.mxu0 %v370
        %663 = vmatprep.subr.mxu0 %v373
        %664 = vmatpush1.msra.mxu0 %v372
        %665 = vmatprep.subr.mxu0 0.0
        %666 = vmatpush1.msra.mxu0 0.0
        %667 = vmatprep.subr.mxu0 0.0
        %668 = vmatpush1.msra.mxu0 0.0
        %669 = vmatprep.subr.mxu0 0.0
        %670 = vmatpush1.msra.mxu0 0.0
        %671 = vmatprep.subr.mxu0 0.0
        %672 = vmatpush1.msra.mxu0 0.0
        %673 = vmatprep.subr.mxu0 0.0
        %674 = vmatpush1.msra.mxu0 0.0
        %675 = vmatprep.subr.mxu0 0.0
        %676 = vmatpush1.msra.mxu0 0.0
        %677 = vmatprep.subr.mxu0 0.0
        %678 = vmatpush1.msra.mxu0 0.0
        %679 = vmatprep.subr.mxu0 0.0
        %680 = vmatpush1.msra.mxu0 0.0
        %681 = vmatprep.subr.mxu0 0.0
        %682 = vmatpush1.msra.mxu0 0.0
        %683 = vmatprep.subr.mxu0 0.0
        %684 = vmatpush1.msra.mxu0 0.0
        %685 = vmatprep.subr.mxu0 0.0
        %686 = vmatpush1.msra.mxu0 0.0
        %687 = vmatprep.subr.mxu0 0.0
        %688 = vmatpush1.msra.mxu0 0.0
        %689 = vmatprep.subr.mxu0 0.0
        %690 = vmatpush1.msra.mxu0 0.0
        %691 = vmatprep.subr.mxu0 0.0
        %692 = vmatpush1.msra.mxu0 0.0
        %693 = vmatprep.subr.mxu0 0.0
        %694 = vmatpush1.msra.mxu0 0.0
        %695 = vmatprep.subr.mxu0 0.0
        %696 = vmatpush1.msra.mxu0 0.0
        %697 = vmatprep.subr.mxu0 0.0
        %698 = vmatpush1.msra.mxu0 0.0
        %699 = vmatprep.subr.mxu0 0.0
        %700 = vmatpush1.msra.mxu0 0.0
        %701 = vmatprep.subr.mxu0 0.0
        %702 = vmatpush1.msra.mxu0 0.0
        %703 = vmatprep.subr.mxu0 0.0
        %704 = vmatpush1.msra.mxu0 0.0
        %705 = vmatprep.subr.mxu0 0.0
        %706 = vmatpush1.msra.mxu0 0.0
        %707 = vmatprep.subr.mxu0 0.0
        %708 = vmatpush1.msra.mxu0 0.0
        %709 = vmatprep.subr.mxu0 0.0
        %710 = vmatpush1.msra.mxu0 0.0
        %711 = vmatprep.subr.mxu0 0.0
        %712 = vmatpush1.msra.mxu0 0.0
        %713 = vmatprep.mubr.f32.mxu0 0.0
        %714 = vmatmul.mubr.f32.gmra.mrb[0].mxu0 %v647
        %v715 = vpop.f32.mrb[0].mxu0
        %v716 = vadd.f32 0.0, %v715
        %v717 = vpop.f32.mrb[0].mxu0
        %v718 = vadd.f32 0.0, %v717
        %719 = vdwg.mxu0
        %v720 = vadd.f32 %v643, %v716
        %v721 = vxor.u32 %v720, 2147483648
        %v722 = vmul.f32 %v721, 1.442695
        %v723 = vpow.pop %v722
        %v724 = vadd.f32 %v723, 1.0
        %v725 = vrcp.pop %v724
        %v726 = vmul.f32 1.0, %v725
        %v727 = vadd.f32 %v718, %v391
        %v728 = vmul.f32 %v726, %v727
        %v729 = vadd.f32 %v645, %v728
        %v730 = vtanh.pop %v729
        %v731 = vsub.f32 1.0, %v726
        %733 = vrot.lane.b32.xlu0 %v730, 64
        %v734 = vpop.permute.xlu0 %733
        %v736 = vmul.f32 %v731, %v734
        %v737 = vmul.f32 %v726, %v565
        %v738 = vadd.f32 %v736, %v737
        %740 = vrot.lane.b32.xlu0 %v738, 64
        %v741 = vpop.permute.xlu0 %740
        %s743 = scalar_lea.vmem %s326, 8 [#allocation8]
        %744 = vst.msk [vmem:[%s743] sm:$0xff] %vm395, %v741
        %s745 = scalar_lea.vmem %s333, 16
        %v746 = vld [vmem:[%s745] sm:$0xff]
        %v748 = vsel %vm395, %v746, 0
        %750 = vmatprep.subr.mxu0 %v343
        %751 = vmatpush1.msra.mxu0 %v342
        %752 = vmatprep.subr.mxu0 %v345
        %753 = vmatpush1.msra.mxu0 %v344
        %754 = vmatprep.subr.mxu0 %v347
        %755 = vmatpush1.msra.mxu0 %v346
        %756 = vmatprep.subr.mxu0 %v349
        %757 = vmatpush1.msra.mxu0 %v348
        %758 = vmatprep.subr.mxu0 %v351
        %759 = vmatpush1.msra.mxu0 %v350
        %760 = vmatprep.subr.mxu0 %v353
        %761 = vmatpush1.msra.mxu0 %v352
        %762 = vmatprep.subr.mxu0 %v355
        %763 = vmatpush1.msra.mxu0 %v354
        %764 = vmatprep.subr.mxu0 %v357
        %765 = vmatpush1.msra.mxu0 %v356
        %766 = vmatprep.subr.mxu0 0.0
        %767 = vmatpush1.msra.mxu0 0.0
        %768 = vmatprep.subr.mxu0 0.0
        %769 = vmatpush1.msra.mxu0 0.0
        %770 = vmatprep.subr.mxu0 0.0
        %771 = vmatpush1.msra.mxu0 0.0
        %772 = vmatprep.subr.mxu0 0.0
        %773 = vmatpush1.msra.mxu0 0.0
        %774 = vmatprep.subr.mxu0 0.0
        %775 = vmatpush1.msra.mxu0 0.0
        %776 = vmatprep.subr.mxu0 0.0
        %777 = vmatpush1.msra.mxu0 0.0
        %778 = vmatprep.subr.mxu0 0.0
        %779 = vmatpush1.msra.mxu0 0.0
        %780 = vmatprep.subr.mxu0 0.0
        %781 = vmatpush1.msra.mxu0 0.0
        %782 = vmatprep.subr.mxu0 0.0
        %783 = vmatpush1.msra.mxu0 0.0
        %784 = vmatprep.subr.mxu0 0.0
        %785 = vmatpush1.msra.mxu0 0.0
        %786 = vmatprep.subr.mxu0 0.0
        %787 = vmatpush1.msra.mxu0 0.0
        %788 = vmatprep.subr.mxu0 0.0
        %789 = vmatpush1.msra.mxu0 0.0
        %790 = vmatprep.subr.mxu0 0.0
        %791 = vmatpush1.msra.mxu0 0.0
        %792 = vmatprep.subr.mxu0 0.0
        %793 = vmatpush1.msra.mxu0 0.0
        %794 = vmatprep.subr.mxu0 0.0
        %795 = vmatpush1.msra.mxu0 0.0
        %796 = vmatprep.subr.mxu0 0.0
        %797 = vmatpush1.msra.mxu0 0.0
        %798 = vmatprep.subr.mxu0 0.0
        %799 = vmatpush1.msra.mxu0 0.0
        %800 = vmatprep.subr.mxu0 0.0
        %801 = vmatpush1.msra.mxu0 0.0
        %802 = vmatprep.subr.mxu0 0.0
        %803 = vmatpush1.msra.mxu0 0.0
        %804 = vmatprep.subr.mxu0 0.0
        %805 = vmatpush1.msra.mxu0 0.0
        %806 = vmatprep.subr.mxu0 0.0
        %807 = vmatpush1.msra.mxu0 0.0
        %808 = vmatprep.subr.mxu0 0.0
        %809 = vmatpush1.msra.mxu0 0.0
        %810 = vmatprep.subr.mxu0 0.0
        %811 = vmatpush1.msra.mxu0 0.0
        %812 = vmatprep.subr.mxu0 0.0
        %813 = vmatpush1.msra.mxu0 0.0
        %814 = vmatprep.mubr.f32.mxu0 0.0
        %815 = vmatmul.mubr.f32.gmra.mrb[0].mxu0 %v748
        %v816 = vpop.f32.mrb[0].mxu0
        %v817 = vadd.f32 %v379, %v816
        %v818 = vpop.f32.mrb[0].mxu0
        %v819 = vadd.f32 %v383, %v818
        %820 = vdwg.mxu0
        %v821 = vsel %vm395, %v741, 0
        %823 = vmatprep.subr.mxu0 %v359
        %824 = vmatpush1.msra.mxu0 %v358
        %825 = vmatprep.subr.mxu0 %v361
        %826 = vmatpush1.msra.mxu0 %v360
        %827 = vmatprep.subr.mxu0 %v363
        %828 = vmatpush1.msra.mxu0 %v362
        %829 = vmatprep.subr.mxu0 %v365
        %830 = vmatpush1.msra.mxu0 %v364
        %831 = vmatprep.subr.mxu0 %v367
        %832 = vmatpush1.msra.mxu0 %v366
        %833 = vmatprep.subr.mxu0 %v369
        %834 = vmatpush1.msra.mxu0 %v368
        %835 = vmatprep.subr.mxu0 %v371
        %836 = vmatpush1.msra.mxu0 %v370
        %837 = vmatprep.subr.mxu0 %v373
        %838 = vmatpush1.msra.mxu0 %v372
        %839 = vmatprep.subr.mxu0 0.0
        %840 = vmatpush1.msra.mxu0 0.0
        %841 = vmatprep.subr.mxu0 0.0
        %842 = vmatpush1.msra.mxu0 0.0
        %843 = vmatprep.subr.mxu0 0.0
        %844 = vmatpush1.msra.mxu0 0.0
        %845 = vmatprep.subr.mxu0 0.0
        %846 = vmatpush1.msra.mxu0 0.0
        %847 = vmatprep.subr.mxu0 0.0
        %848 = vmatpush1.msra.mxu0 0.0
        %849 = vmatprep.subr.mxu0 0.0
        %850 = vmatpush1.msra.mxu0 0.0
        %851 = vmatprep.subr.mxu0 0.0
        %852 = vmatpush1.msra.mxu0 0.0
        %853 = vmatprep.subr.mxu0 0.0
        %854 = vmatpush1.msra.mxu0 0.0
        %855 = vmatprep.subr.mxu0 0.0
        %856 = vmatpush1.msra.mxu0 0.0
        %857 = vmatprep.subr.mxu0 0.0
        %858 = vmatpush1.msra.mxu0 0.0
        %859 = vmatprep.subr.mxu0 0.0
        %860 = vmatpush1.msra.mxu0 0.0
        %861 = vmatprep.subr.mxu0 0.0
        %862 = vmatpush1.msra.mxu0 0.0
        %863 = vmatprep.subr.mxu0 0.0
        %864 = vmatpush1.msra.mxu0 0.0
        %865 = vmatprep.subr.mxu0 0.0
        %866 = vmatpush1.msra.mxu0 0.0
        %867 = vmatprep.subr.mxu0 0.0
        %868 = vmatpush1.msra.mxu0 0.0
        %869 = vmatprep.subr.mxu0 0.0
        %870 = vmatpush1.msra.mxu0 0.0
        %871 = vmatprep.subr.mxu0 0.0
        %872 = vmatpush1.msra.mxu0 0.0
        %873 = vmatprep.subr.mxu0 0.0
        %874 = vmatpush1.msra.mxu0 0.0
        %875 = vmatprep.subr.mxu0 0.0
        %876 = vmatpush1.msra.mxu0 0.0
        %877 = vmatprep.subr.mxu0 0.0
        %878 = vmatpush1.msra.mxu0 0.0
        %879 = vmatprep.subr.mxu0 0.0
        %880 = vmatpush1.msra.mxu0 0.0
        %881 = vmatprep.subr.mxu0 0.0
        %882 = vmatpush1.msra.mxu0 0.0
        %883 = vmatprep.subr.mxu0 0.0
        %884 = vmatpush1.msra.mxu0 0.0
        %885 = vmatprep.subr.mxu0 0.0
        %886 = vmatpush1.msra.mxu0 0.0
        %887 = vmatprep.mubr.f32.mxu0 0.0
        %888 = vmatmul.mubr.f32.gmra.mrb[0].mxu0 %v821
        %v889 = vpop.f32.mrb[0].mxu0
        %v890 = vadd.f32 0.0, %v889
        %v891 = vpop.f32.mrb[0].mxu0
        %v892 = vadd.f32 0.0, %v891
        %893 = vdwg.mxu0
        %v894 = vadd.f32 %v817, %v890
        %v895 = vxor.u32 %v894, 2147483648
        %v896 = vmul.f32 %v895, 1.442695
        %v897 = vpow.pop %v896
        %v898 = vadd.f32 %v897, 1.0
        %v899 = vrcp.pop %v898
        %v900 = vmul.f32 1.0, %v899
        %v901 = vadd.f32 %v892, %v391
        %v902 = vmul.f32 %v900, %v901
        %v903 = vadd.f32 %v819, %v902
        %v904 = vtanh.pop %v903
        %v905 = vsub.f32 1.0, %v900
        %907 = vrot.lane.b32.xlu0 %v904, 64
        %v908 = vpop.permute.xlu0 %907
        %v910 = vmul.f32 %v905, %v908
        %v911 = vmul.f32 %v900, %v738
        %v912 = vadd.f32 %v910, %v911
        %914 = vrot.lane.b32.xlu0 %v912, 64
        %v915 = vpop.permute.xlu0 %914
        %s917 = scalar_lea.vmem %s326, 16 [#allocation8]
        %918 = vst.msk [vmem:[%s917] sm:$0xff] %vm395, %v915
        %s919 = scalar_lea.vmem %s333, 24
        %v920 = vld [vmem:[%s919] sm:$0xff]
        %v922 = vsel %vm395, %v920, 0
        %924 = vmatprep.subr.mxu0 %v343
        %925 = vmatpush1.msra.mxu0 %v342
        %926 = vmatprep.subr.mxu0 %v345
        %927 = vmatpush1.msra.mxu0 %v344
        %928 = vmatprep.subr.mxu0 %v347
        %929 = vmatpush1.msra.mxu0 %v346
        %930 = vmatprep.subr.mxu0 %v349
        %931 = vmatpush1.msra.mxu0 %v348
        %932 = vmatprep.subr.mxu0 %v351
        %933 = vmatpush1.msra.mxu0 %v350
        %934 = vmatprep.subr.mxu0 %v353
        %935 = vmatpush1.msra.mxu0 %v352
        %936 = vmatprep.subr.mxu0 %v355
        %937 = vmatpush1.msra.mxu0 %v354
        %938 = vmatprep.subr.mxu0 %v357
        %939 = vmatpush1.msra.mxu0 %v356
        %940 = vmatprep.subr.mxu0 0.0
        %941 = vmatpush1.msra.mxu0 0.0
        %942 = vmatprep.subr.mxu0 0.0
        %943 = vmatpush1.msra.mxu0 0.0
        %944 = vmatprep.subr.mxu0 0.0
        %945 = vmatpush1.msra.mxu0 0.0
        %946 = vmatprep.subr.mxu0 0.0
        %947 = vmatpush1.msra.mxu0 0.0
        %948 = vmatprep.subr.mxu0 0.0
        %949 = vmatpush1.msra.mxu0 0.0
        %950 = vmatprep.subr.mxu0 0.0
        %951 = vmatpush1.msra.mxu0 0.0
        %952 = vmatprep.subr.mxu0 0.0
        %953 = vmatpush1.msra.mxu0 0.0
        %954 = vmatprep.subr.mxu0 0.0
        %955 = vmatpush1.msra.mxu0 0.0
        %956 = vmatprep.subr.mxu0 0.0
        %957 = vmatpush1.msra.mxu0 0.0
        %958 = vmatprep.subr.mxu0 0.0
        %959 = vmatpush1.msra.mxu0 0.0
        %960 = vmatprep.subr.mxu0 0.0
        %961 = vmatpush1.msra.mxu0 0.0
        %962 = vmatprep.subr.mxu0 0.0
        %963 = vmatpush1.msra.mxu0 0.0
        %964 = vmatprep.subr.mxu0 0.0
        %965 = vmatpush1.msra.mxu0 0.0
        %966 = vmatprep.subr.mxu0 0.0
        %967 = vmatpush1.msra.mxu0 0.0
        %968 = vmatprep.subr.mxu0 0.0
        %969 = vmatpush1.msra.mxu0 0.0
        %970 = vmatprep.subr.mxu0 0.0
        %971 = vmatpush1.msra.mxu0 0.0
        %972 = vmatprep.subr.mxu0 0.0
        %973 = vmatpush1.msra.mxu0 0.0
        %974 = vmatprep.subr.mxu0 0.0
        %975 = vmatpush1.msra.mxu0 0.0
        %976 = vmatprep.subr.mxu0 0.0
        %977 = vmatpush1.msra.mxu0 0.0
        %978 = vmatprep.subr.mxu0 0.0
        %979 = vmatpush1.msra.mxu0 0.0
        %980 = vmatprep.subr.mxu0 0.0
        %981 = vmatpush1.msra.mxu0 0.0
        %982 = vmatprep.subr.mxu0 0.0
        %983 = vmatpush1.msra.mxu0 0.0
        %984 = vmatprep.subr.mxu0 0.0
        %985 = vmatpush1.msra.mxu0 0.0
        %986 = vmatprep.subr.mxu0 0.0
        %987 = vmatpush1.msra.mxu0 0.0
        %988 = vmatprep.mubr.f32.mxu0 0.0
        %989 = vmatmul.mubr.f32.gmra.mrb[0].mxu0 %v922
        %v990 = vpop.f32.mrb[0].mxu0
        %v991 = vadd.f32 %v379, %v990
        %v992 = vpop.f32.mrb[0].mxu0
        %v993 = vadd.f32 %v383, %v992
        %994 = vdwg.mxu0
        %v995 = vsel %vm395, %v915, 0
        %997 = vmatprep.subr.mxu0 %v359
        %998 = vmatpush1.msra.mxu0 %v358
        %999 = vmatprep.subr.mxu0 %v361
        %1000 = vmatpush1.msra.mxu0 %v360
        %1001 = vmatprep.subr.mxu0 %v363
        %1002 = vmatpush1.msra.mxu0 %v362
        %1003 = vmatprep.subr.mxu0 %v365
        %1004 = vmatpush1.msra.mxu0 %v364
        %1005 = vmatprep.subr.mxu0 %v367
        %1006 = vmatpush1.msra.mxu0 %v366
        %1007 = vmatprep.subr.mxu0 %v369
        %1008 = vmatpush1.msra.mxu0 %v368
        %1009 = vmatprep.subr.mxu0 %v371
        %1010 = vmatpush1.msra.mxu0 %v370
        %1011 = vmatprep.subr.mxu0 %v373
        %1012 = vmatpush1.msra.mxu0 %v372
        %1013 = vmatprep.subr.mxu0 0.0
        %1014 = vmatpush1.msra.mxu0 0.0
        %1015 = vmatprep.subr.mxu0 0.0
        %1016 = vmatpush1.msra.mxu0 0.0
        %1017 = vmatprep.subr.mxu0 0.0
        %1018 = vmatpush1.msra.mxu0 0.0
        %1019 = vmatprep.subr.mxu0 0.0
        %1020 = vmatpush1.msra.mxu0 0.0
        %1021 = vmatprep.subr.mxu0 0.0
        %1022 = vmatpush1.msra.mxu0 0.0
        %1023 = vmatprep.subr.mxu0 0.0
        %1024 = vmatpush1.msra.mxu0 0.0
        %1025 = vmatprep.subr.mxu0 0.0
        %1026 = vmatpush1.msra.mxu0 0.0
        %1027 = vmatprep.subr.mxu0 0.0
        %1028 = vmatpush1.msra.mxu0 0.0
        %1029 = vmatprep.subr.mxu0 0.0
        %1030 = vmatpush1.msra.mxu0 0.0
        %1031 = vmatprep.subr.mxu0 0.0
        %1032 = vmatpush1.msra.mxu0 0.0
        %1033 = vmatprep.subr.mxu0 0.0
        %1034 = vmatpush1.msra.mxu0 0.0
        %1035 = vmatprep.subr.mxu0 0.0
        %1036 = vmatpush1.msra.mxu0 0.0
        %1037 = vmatprep.subr.mxu0 0.0
        %1038 = vmatpush1.msra.mxu0 0.0
        %1039 = vmatprep.subr.mxu0 0.0
        %1040 = vmatpush1.msra.mxu0 0.0
        %1041 = vmatprep.subr.mxu0 0.0
        %1042 = vmatpush1.msra.mxu0 0.0
        %1043 = vmatprep.subr.mxu0 0.0
        %1044 = vmatpush1.msra.mxu0 0.0
        %1045 = vmatprep.subr.mxu0 0.0
        %1046 = vmatpush1.msra.mxu0 0.0
        %1047 = vmatprep.subr.mxu0 0.0
        %1048 = vmatpush1.msra.mxu0 0.0
        %1049 = vmatprep.subr.mxu0 0.0
        %1050 = vmatpush1.msra.mxu0 0.0
        %1051 = vmatprep.subr.mxu0 0.0
        %1052 = vmatpush1.msra.mxu0 0.0
        %1053 = vmatprep.subr.mxu0 0.0
        %1054 = vmatpush1.msra.mxu0 0.0
        %1055 = vmatprep.subr.mxu0 0.0
        %1056 = vmatpush1.msra.mxu0 0.0
        %1057 = vmatprep.subr.mxu0 0.0
        %1058 = vmatpush1.msra.mxu0 0.0
        %1059 = vmatprep.subr.mxu0 0.0
        %1060 = vmatpush1.msra.mxu0 0.0
        %1061 = vmatprep.mubr.f32.mxu0 0.0
        %1062 = vmatmul.mubr.f32.gmra.mrb[0].mxu0 %v995
        %v1063 = vpop.f32.mrb[0].mxu0
        %v1064 = vadd.f32 0.0, %v1063
        %v1065 = vpop.f32.mrb[0].mxu0
        %v1066 = vadd.f32 0.0, %v1065
        %1067 = vdwg.mxu0
        %v1068 = vadd.f32 %v991, %v1064
        %v1069 = vxor.u32 %v1068, 2147483648
        %v1070 = vmul.f32 %v1069, 1.442695
        %v1071 = vpow.pop %v1070
        %v1072 = vadd.f32 %v1071, 1.0
        %v1073 = vrcp.pop %v1072
        %v1074 = vmul.f32 1.0, %v1073
        %v1075 = vadd.f32 %v1066, %v391
        %v1076 = vmul.f32 %v1074, %v1075
        %v1077 = vadd.f32 %v993, %v1076
        %v1078 = vtanh.pop %v1077
        %v1079 = vsub.f32 1.0, %v1074
        %1081 = vrot.lane.b32.xlu0 %v1078, 64
        %v1082 = vpop.permute.xlu0 %1081
        %v1084 = vmul.f32 %v1079, %v1082
        %v1085 = vmul.f32 %v1074, %v912
        %v1086 = vadd.f32 %v1084, %v1085
        %1088 = vrot.lane.b32.xlu0 %v1086, 64
        %v1089 = vpop.permute.xlu0 %1088
        %s1091 = scalar_lea.vmem %s326, 24 [#allocation8]
        %1092 = vst.msk [vmem:[%s1091] sm:$0xff] %vm395, %v1089
        %1093 = vst.msk [vmem:[#allocation2] sm:$0xff] %vm395, %v1089
        %p1094 = scmp.eq.s32.totalorder %s26, 1
        // Predicated region
        $region61: #{tpu_custom_call.1} parent=47 // pred_check
          %p1095 = pneg %p1094
        $region62: #{tpu_custom_call.1} parent=47 // pred_check_branch
          %1097 = sbr.rel (%p1095) target = $region64
        $region63: #{tpu_custom_call.1} parent=47 // pred_region
          %v1098 = vld [vmem:[#allocation2] sm:$0xff]
          %v1099 = vld [vmem:[%s5] sm:$0xff]
          %v1100 = vld [vmem:[%s5 + $0x8] sm:$0xff]
          %v1101 = vld [vmem:[%s5 + $0x10] sm:$0xff]
          %v1102 = vld [vmem:[%s5 + $0x18] sm:$0xff]
          %v1103 = vld [vmem:[%s5 + $0x20] sm:$0xff]
          %v1104 = vld [vmem:[%s5 + $0x28] sm:$0xff]
          %v1105 = vld [vmem:[%s5 + $0x30] sm:$0xff]
          %v1106 = vld [vmem:[%s5 + $0x38] sm:$0xff]
          %v1107 = vld [vmem:[%s6] sm:$0x1]
          %v1109 = vlaneseq
          %v1110 = vshrl.u32 %v1109, 7
          %v1111 = vsub.s32 0, %v1110
          %v1112 = vrot.slane %v1107, %v1111
          %v1115 = vsel %vm395, %v1098, 0
          %1117 = vmatprep.subr.mxu0 0.0
          %1118 = vmatpush1.msra.mxu0 %v1099
          %1119 = vmatprep.subr.mxu0 0.0
          %1120 = vmatpush1.msra.mxu0 %v1100
          %1121 = vmatprep.subr.mxu0 0.0
          %1122 = vmatpush1.msra.mxu0 %v1101
          %1123 = vmatprep.subr.mxu0 0.0
          %1124 = vmatpush1.msra.mxu0 %v1102
          %1125 = vmatprep.subr.mxu0 0.0
          %1126 = vmatpush1.msra.mxu0 %v1103
          %1127 = vmatprep.subr.mxu0 0.0
          %1128 = vmatpush1.msra.mxu0 %v1104
          %1129 = vmatprep.subr.mxu0 0.0
          %1130 = vmatpush1.msra.mxu0 %v1105
          %1131 = vmatprep.subr.mxu0 0.0
          %1132 = vmatpush1.msra.mxu0 %v1106
          %1133 = vmatprep.subr.mxu0 0.0
          %1134 = vmatpush1.msra.mxu0 0.0
          %1135 = vmatprep.subr.mxu0 0.0
          %1136 = vmatpush1.msra.mxu0 0.0
          %1137 = vmatprep.subr.mxu0 0.0
          %1138 = vmatpush1.msra.mxu0 0.0
          %1139 = vmatprep.subr.mxu0 0.0
          %1140 = vmatpush1.msra.mxu0 0.0
          %1141 = vmatprep.subr.mxu0 0.0
          %1142 = vmatpush1.msra.mxu0 0.0
          %1143 = vmatprep.subr.mxu0 0.0
          %1144 = vmatpush1.msra.mxu0 0.0
          %1145 = vmatprep.subr.mxu0 0.0
          %1146 = vmatpush1.msra.mxu0 0.0
          %1147 = vmatprep.subr.mxu0 0.0
          %1148 = vmatpush1.msra.mxu0 0.0
          %1149 = vmatprep.subr.mxu0 0.0
          %1150 = vmatpush1.msra.mxu0 0.0
          %1151 = vmatprep.subr.mxu0 0.0
          %1152 = vmatpush1.msra.mxu0 0.0
          %1153 = vmatprep.subr.mxu0 0.0
          %1154 = vmatpush1.msra.mxu0 0.0
          %1155 = vmatprep.subr.mxu0 0.0
          %1156 = vmatpush1.msra.mxu0 0.0
          %1157 = vmatprep.subr.mxu0 0.0
          %1158 = vmatpush1.msra.mxu0 0.0
          %1159 = vmatprep.subr.mxu0 0.0
          %1160 = vmatpush1.msra.mxu0 0.0
          %1161 = vmatprep.subr.mxu0 0.0
          %1162 = vmatpush1.msra.mxu0 0.0
          %1163 = vmatprep.subr.mxu0 0.0
          %1164 = vmatpush1.msra.mxu0 0.0
          %1165 = vmatprep.subr.mxu0 0.0
          %1166 = vmatpush1.msra.mxu0 0.0
          %1167 = vmatprep.subr.mxu0 0.0
          %1168 = vmatpush1.msra.mxu0 0.0
          %1169 = vmatprep.subr.mxu0 0.0
          %1170 = vmatpush1.msra.mxu0 0.0
          %1171 = vmatprep.subr.mxu0 0.0
          %1172 = vmatpush1.msra.mxu0 0.0
          %1173 = vmatprep.subr.mxu0 0.0
          %1174 = vmatpush1.msra.mxu0 0.0
          %1175 = vmatprep.subr.mxu0 0.0
          %1176 = vmatpush1.msra.mxu0 0.0
          %1177 = vmatprep.subr.mxu0 0.0
          %1178 = vmatpush1.msra.mxu0 0.0
          %1179 = vmatprep.subr.mxu0 0.0
          %1180 = vmatpush1.msra.mxu0 0.0
          %1181 = vmatprep.mubr.f32.mxu0 0.0
          %1182 = vmatmul.mubr.f32.gmra.mrb[0].mxu0 %v1115
          %v1183 = vpop.f32.mrb[0].mxu0
          %v1184 = vadd.f32 %v1112, %v1183
          %v1185 = vpop.f32.mrb[0].mxu0
          %1186 = vdwg.mxu0
          %v1187 = vtanh.pop %v1184
          %vm1188 = vcmask 261120
          %1189 = vst.msk [vmem:[#allocation9] sm:$0xff] %vm1188, %v1187
        $region64: #{tpu_custom_call.1} parent=47 // pred_fallthru
          _
        %s1190 = sand.u32 %s186, 1
        %s1191 = scalar_lea.sflag [#allocation5], %s1190
        %s1192 = sand.u32 %s186, 1
        %s1193 = smul.addr %s1192, 32
        %s1194 = scalar_lea.vmem [#allocation8], %s1193
        // Predicated region
        $region65: #{tpu_custom_call.1} parent=47 // pred_check
          %p1195 = pneg %p196
        $region66: #{tpu_custom_call.1} parent=47 // pred_check_branch
          %1197 = sbr.rel (%p1195) target = $region68
        $region67: #{tpu_custom_call.1} parent=47 // pred_region
          %s1198 = smul.u32 4, %s26
          %s1200 = ssub.s32 512, 512
          %1201 = vsyncadd %s1191, %s1200
          %s1202 = smul.addr %s1198, 128
          %s1203 = scalar_lea.hbm %s7, %s1202
          %s1204 = sshll.u32 %s1194, 4
          %s1205 = int_to_ptr.vmem [resolvable:$true] %s1204
          %1210 = dma.vmem_to_hbm [thread:$0]  %s1205, 512, %s1203, %s1191, 128, 128, 8
        $region68: #{tpu_custom_call.1} parent=47 // pred_fallthru
          _
        // Predicated region
        $region69: #{tpu_custom_call.1} parent=47 // pred_check
          %p1211 = pneg %p217
        $region70: #{tpu_custom_call.1} parent=47 // pred_check_branch
          %1213 = sbr.rel (%p1211) target = $region72
        $region71: #{tpu_custom_call.1} parent=47 // pred_region
          %s1215 = ssub.s32 128, 128
          %1216 = vsyncadd [#allocation10], %s1215
          %s1218 = sshll.u32 [#allocation9], 4
          %s1219 = int_to_ptr.vmem [resolvable:$true] %s1218
          %1221 = dma.vmem_to_hbm [thread:$0]  %s1219, 128, %s8, [#allocation10]
        $region72: #{tpu_custom_call.1} parent=47 // pred_fallthru
          _
        // Predicated region
        $region73: #{tpu_custom_call.1} parent=47 // pred_check
          %p1222 = pneg %p217
        $region74: #{tpu_custom_call.1} parent=47 // pred_check_branch
          %1224 = sbr.rel (%p1222) target = $region76
        $region75: #{tpu_custom_call.1} parent=47 // pred_region
          %1225 = dma.done [#allocation10], 128
        $region76: #{tpu_custom_call.1} parent=47 // pred_fallthru
          _
      $region48: #{tpu_custom_call.1} parent=5 // pred_fallthru
        _
      %p1226 = scmp.le.s32.totalorder 2, %s21
      // Predicated region
      $region77: #{tpu_custom_call.1} parent=5 // pred_check
        %p1227 = pneg %p1226
      $region78: #{tpu_custom_call.1} parent=5 // pred_check_branch
        %1229 = sbr.rel (%p1227) target = $region80
      $region79: #{tpu_custom_call.1} parent=5 // pred_region
        %s1230 = ssub.s32 %s21, 2
        // Predicated region
        $region81: #{tpu_custom_call.1} parent=79 // pred_check
          %p1231 = pneg %p202
        $region82: #{tpu_custom_call.1} parent=79 // pred_check_branch
          %1233 = sbr.rel (%p1231) target = $region84
        $region83: #{tpu_custom_call.1} parent=79 // pred_region
          %s1234 = sand.u32 %s187, 1
          %s1235 = scalar_lea.sflag [#allocation5], %s1234
          %s1236 = sand.u32 %s187, 1
          %s1237 = smul.addr %s1236, 32
          %s1238 = scalar_lea.vmem [#allocation8], %s1237
          %1239 = dma.done %s1235, 512
        $region84: #{tpu_custom_call.1} parent=79 // pred_fallthru
          _
      $region80: #{tpu_custom_call.1} parent=5 // pred_fallthru
        _
    $region6: #{tpu_custom_call.1} parent=1 // loop_footer
      %s25 = sadd.s32 1, %s21
    $region7: #{tpu_custom_call.1} parent=1 // loop_footer_branch
      %20 = sbr.rel target = $region3
    $region8: #{tpu_custom_call.1} parent=1 // loop_exit
      _
    %1240 = vsyncpa [#allocation4], 1
    %s1241 = scalar_lea.sflag [#allocation4], 1
    %1242 = vsyncpa %s1241, 1
    %1243 = vsyncpa [#allocation7], 1
    %1244 = vsyncpa [#allocation5], 1
    %s1245 = scalar_lea.sflag [#allocation5], 1
    %1246 = vsyncpa %s1245, 1
    %1247 = vsyncpa [#allocation10], 1

</llo_original>
